<compile_context>
chip_gen: v7x
topology: tpu7x:2x2x1
jax: 0.10.0
libtpu: 0.0.40
codegen_flags: <defaults>
</compile_context>

<pallas_src>
import numpy as np
import jax
import jax.numpy as jnp
from jax import lax
from jax.experimental import pallas as pl
from jax.experimental.pallas import tpu as pltpu

N_HEADS = 4            # n_heads
IN_FEATS = 32          # in_features
HEAD_OUT = 32          # head_out_feats
D = N_HEADS * HEAD_OUT # = 128, lane-dense concat width
NEG_SLOPE = 0.2
NEG_INF = -1e30


# --------------------------------------------------------------------------- #
# Kernel 1: GATConv, row-tiled over target nodes (grid axis is "parallel").
# --------------------------------------------------------------------------- #
def gat_kernel(adj_ref, xt_ref, xs_ref, xsT_ref, w_ref, wT_ref,
               a_srcT_ref, a_dst_ref, b_ref, h_ref):
    tile_n, n_nodes = adj_ref.shape

    # Shared GAT projection, in both orientations (all on the MXU).
    xp_src = jnp.dot(xs_ref[...], w_ref[...], preferred_element_type=jnp.float32)    # (N, D)
    xpT = jnp.dot(wT_ref[...], xsT_ref[...], preferred_element_type=jnp.float32)     # (D, N)
    xp_dst = jnp.dot(xt_ref[...], w_ref[...], preferred_element_type=jnp.float32)    # (T, D)

    # Attention coefficients: one MXU matmul each instead of per-head VPU
    # multiplies + cross-lane reductions.
    asrc_t = jnp.dot(a_srcT_ref[...], xpT, preferred_element_type=jnp.float32)       # (H, N)
    adst = jnp.dot(xp_dst, a_dst_ref[...], preferred_element_type=jnp.float32)       # (T, H)

    # Edge mask with in-kernel self-loops (no N x N identity input).
    base = pl.program_id(0) * tile_n
    rows = base + lax.broadcasted_iota(jnp.int32, (tile_n, n_nodes), 0)
    cols = lax.broadcasted_iota(jnp.int32, (tile_n, n_nodes), 1)
    em = (adj_ref[...] > 0) | (rows == cols)                                          # (T, N)

    for hd in range(N_HEADS):
        sl = slice(hd * HEAD_OUT, (hd + 1) * HEAD_OUT)
        e = adst[:, hd:hd + 1] + asrc_t[hd:hd + 1, :]        # (T, N): e[i, j]
        e = jnp.maximum(e, NEG_SLOPE * e)                    # leaky_relu(0.2)
        e = jnp.where(em, e, NEG_INF)                        # mask non-edges
        m = jnp.max(e, axis=-1, keepdims=True)               # finite (self-loop present)
        p = jnp.exp(e - m)                                   # non-edges underflow to 0
        attn = p / jnp.sum(p, axis=-1, keepdims=True)        # softmax over sources j
        # Write this head's 32-lane slice directly (no lane concat).
        h_ref[:, sl] = (jnp.dot(attn, xp_src[:, sl], preferred_element_type=jnp.float32)
                        + b_ref[:, sl])


# --------------------------------------------------------------------------- #
# Kernel 2: SAGPooling score (GraphConv D->1, per-graph softmax) + add-pool.
# --------------------------------------------------------------------------- #
def pool_kernel(h_ref, adj_ref, mask_ref, maskT_ref, w2_ref, b_gnn_ref,
                score_ref, emb_ref):
    h = h_ref[...]                                                    # (N, D)
    # Fused (D,2) projection: col 0 = h @ w_rel, col 1 = h @ w_root.
    hw = jnp.dot(h, w2_ref[...], preferred_element_type=jnp.float32)  # (N, 2)
    hr = hw[:, 0:1]
    hroot = hw[:, 1:2]
    # Reassociated GraphConv: adj @ (h @ w_rel) — (N,N)@(N,1) instead of (N,N)@(N,D).
    adj = adj_ref[...].astype(jnp.float32)
    s = jnp.dot(adj, hr, preferred_element_type=jnp.float32) + hroot + b_gnn_ref[...]  # (N,1)

    # Per-graph softmax via the 0/1 membership masks.
    maskT = maskT_ref[...]                                    # (N, G)
    masked_s = jnp.where(maskT > 0, s, NEG_INF)               # (N, G)
    g_max = jnp.max(masked_s, axis=0, keepdims=True)          # (1, G)
    n_max = jnp.sum(maskT * g_max, axis=-1, keepdims=True)    # (N, 1)
    exp_s = jnp.exp(s - n_max)                                # (N, 1)
    g_den = jnp.sum(maskT * exp_s, axis=0, keepdims=True)     # (1, G)
    n_den = jnp.sum(maskT * g_den, axis=-1, keepdims=True)    # (N, 1)
    score = exp_s / n_den
    score_ref[...] = score                                    # (N, 1) — tiny, accept 1-lane store

    # min_score=-1 keeps every node: pooled x = h * score; then global_add_pool.
    emb_ref[...] = jnp.dot(mask_ref[...], h * score, preferred_element_type=jnp.float32)


# --------------------------------------------------------------------------- #
# Wrapper
# --------------------------------------------------------------------------- #
def ssi_ddi_block(x, adj, mask, params, *, tile_n=None):
    x = jnp.asarray(x, jnp.float32)
    adj = jnp.asarray(adj, jnp.float32)
    mask = jnp.asarray(mask, jnp.float32)
    N, Fin = x.shape
    G = mask.shape[0]

    if tile_n is None:
        tile_n = N
        for cand in (512, 256, 128, 64, 32, 16, 8):
            if cand <= N and N % cand == 0:
                tile_n = cand
                break
    assert N % tile_n == 0 and (tile_n == N or tile_n % 8 == 0)
    grid_n = N // tile_n

    # ---- weight / layout glue (no activation compute hoisted) ----
    a_src_np = np.asarray(params["a_src"], np.float32)   # (H, F')
    a_dst_np = np.asarray(params["a_dst"], np.float32)   # (H, F')
    a_srcT = np.zeros((N_HEADS, D), np.float32)          # row hd holds a_src[hd] in its head block
    a_dst_m = np.zeros((D, N_HEADS), np.float32)         # col hd holds a_dst[hd] in its head block
    for hd in range(N_HEADS):
        a_srcT[hd, hd * HEAD_OUT:(hd + 1) * HEAD_OUT] = a_src_np[hd]
        a_dst_m[hd * HEAD_OUT:(hd + 1) * HEAD_OUT, hd] = a_dst_np[hd]
    a_srcT = jnp.asarray(a_srcT)
    a_dst_m = jnp.asarray(a_dst_m)
    w_gat = jnp.asarray(params["w_gat"], jnp.float32)
    w_gatT = w_gat.T
    w2 = jnp.concatenate([params["w_rel"], params["w_root"]], axis=1)  # (D, 2)
    adj_c = adj.astype(jnp.bfloat16)   # 0/1 exact in bf16 — halves the N^2 stream
    xT = x.T
    maskT = mask.T

    cost1 = pl.CostEstimate(
        flops=int(2 * N * N * D + 2 * N * N * N_HEADS
                  + 2 * (2 * grid_n + 1) * N * Fin * D),
        transcendentals=int(N * N * N_HEADS),
        bytes_accessed=int(2 * N * N + 4 * (2 * N * Fin * (grid_n + 1) + N * D
                                            + 2 * Fin * D + 2 * N_HEADS * D + D)),
    )

    # ---- pass 1: GATConv, row-tiled over target nodes ----
    h = pl.pallas_call(
        gat_kernel,
        out_shape=jax.ShapeDtypeStruct((N, D), jnp.float32),
        grid=(grid_n,),
        in_specs=[
            pl.BlockSpec((tile_n, N), lambda i: (i, 0)),     # adj row block (targets)
            pl.BlockSpec((tile_n, Fin), lambda i: (i, 0)),   # x rows of this block's targets
            pl.BlockSpec((N, Fin), lambda i: (0, 0)),        # x, all source nodes
            pl.BlockSpec((Fin, N), lambda i: (0, 0)),        # x^T (lane-major sources)
            pl.BlockSpec((Fin, D), lambda i: (0, 0)),        # W_gat
            pl.BlockSpec((D, Fin), lambda i: (0, 0)),        # W_gat^T
            pl.BlockSpec((N_HEADS, D), lambda i: (0, 0)),    # packed a_src (H, D)
            pl.BlockSpec((D, N_HEADS), lambda i: (0, 0)),    # packed a_dst (D, H)
            pl.BlockSpec((1, D), lambda i: (0, 0)),          # GAT bias
        ],
        out_specs=pl.BlockSpec((tile_n, D), lambda i: (i, 0)),
        compiler_params=pltpu.CompilerParams(
            dimension_semantics=("parallel",),
            vmem_limit_bytes=32 * 1024 * 1024),
        cost_estimate=cost1,
    )(adj_c, x, x, xT, w_gat, w_gatT, a_srcT, a_dst_m, params["b_gat"])

    # ---- pass 2: SAGPooling score + global_add_pool (small, un-gridded) ----
    vmem = pl.BlockSpec(memory_space=pltpu.MemorySpace.VMEM)
    score, emb = pl.pallas_call(
        pool_kernel,
        out_shape=(jax.ShapeDtypeStruct((N, 1), jnp.float32),   # att_scores (all nodes kept)
                   jax.ShapeDtypeStruct((G, D), jnp.float32)),  # global_graph_emb
        in_specs=[vmem] * 6,
        out_specs=(vmem, vmem),
        compiler_params=pltpu.CompilerParams(vmem_limit_bytes=32 * 1024 * 1024),
    )(h, adj_c, mask, maskT, w2, params["b_gnn"])

    return h, score, emb


# --------------------------------------------------------------------------- #
# Pure-JAX mirror of the same dense-graph math (sanity check).
# --------------------------------------------------------------------------- #
def reference(x, adj, mask, params):
    N = x.shape[0]
    adj_sl = jnp.maximum(adj, jnp.eye(N, dtype=jnp.float32))
    xp = x @ params["w_gat"]
    outs = []
    for hd in range(N_HEADS):
        xh = xp[:, hd * HEAD_OUT:(hd + 1) * HEAD_OUT]
        a_s = jnp.sum(xh * params["a_src"][hd][None, :], axis=-1)
        a_d = jnp.sum(xh * params["a_dst"][hd][None, :], axis=-1)
        e = a_d[:, None] + a_s[None, :]
        e = jnp.where(e > 0, e, NEG_SLOPE * e)
        e = jnp.where(adj_sl > 0, e, NEG_INF)
        m = jnp.max(e, axis=-1, keepdims=True)
        p = jnp.where(adj_sl > 0, jnp.exp(e - m), 0.0)
        attn = p / jnp.sum(p, axis=-1, keepdims=True)
        outs.append(attn @ xh)
    h = jnp.concatenate(outs, axis=-1) + params["b_gat"]
    neigh = adj @ h
    s = (neigh @ params["w_rel"] + h @ params["w_root"] + params["b_gnn"])[:, 0]
    g_max = jnp.max(jnp.where(mask > 0, s[None, :], NEG_INF), axis=1)
    n_max = mask.T @ g_max
    exp_s = jnp.exp(s - n_max)
    den = mask.T @ (mask @ exp_s)
    score = exp_s / den
    att_x = h * score[:, None]
    emb = mask @ att_x
    return h, score, emb


if __name__ == "__main__":
    N, G = 16, 2                      # 2 graphs x 8 nodes
    npg = N // G

    # deterministic bidirectional ring within each graph
    src, dst = [], []
    for g in range(G):
        base = g * npg
        for i in range(npg):
            a = base + i
            b = base + (i + 1) % npg
            src += [a, b]
            dst += [b, a]
    adj_np = np.zeros((N, N), np.float32)
    adj_np[np.array(dst), np.array(src)] = 1.0        # adj[target, source]
    adj = jnp.asarray(adj_np)

    batch = np.repeat(np.arange(G), npg)
    mask = jnp.asarray((batch[None, :] == np.arange(G)[:, None]).astype(np.float32))

    key = jax.random.PRNGKey(0)
    keys = jax.random.split(key, 8)
    x = jax.random.normal(keys[0], (N, IN_FEATS), jnp.float32)
    scale = 0.2
    params = {
        "w_gat": scale * jax.random.normal(keys[1], (IN_FEATS, D), jnp.float32),
        "a_src": scale * jax.random.normal(keys[2], (N_HEADS, HEAD_OUT), jnp.float32),
        "a_dst": scale * jax.random.normal(keys[3], (N_HEADS, HEAD_OUT), jnp.float32),
        "b_gat": scale * jax.random.normal(keys[4], (1, D), jnp.float32),
        "w_rel": scale * jax.random.normal(keys[5], (D, 1), jnp.float32),
        "w_root": scale * jax.random.normal(keys[6], (D, 1), jnp.float32),
        "b_gnn": scale * jax.random.normal(keys[7], (1, 1), jnp.float32),
    }

    # tile_n=8 -> grid of 2 row blocks, exercising the gridded/pipelined path.
    h, score, emb = jax.block_until_ready(ssi_ddi_block(x, adj, mask, params, tile_n=8))

    h_ref, score_ref, emb_ref = reference(x, adj, mask, params)
    assert np.allclose(np.asarray(h), np.asarray(h_ref), rtol=1e-4, atol=1e-4)
    assert np.allclose(np.asarray(score)[:, 0], np.asarray(score_ref), rtol=1e-4, atol=1e-4)
    assert np.allclose(np.asarray(emb), np.asarray(emb_ref), rtol=1e-4, atol=1e-4)
    print("KERNEL_OK")
</pallas_src>

<mosaic_0001>
module attributes {stable_mosaic.version = 11 : i64} {
  func.func @gat_kernel(%arg0: i32, %arg1: memref<8x16xbf16, #tpu.memory_space<vmem>>, %arg2: memref<8x32xf32, #tpu.memory_space<vmem>>, %arg3: memref<16x32xf32, #tpu.memory_space<vmem>>, %arg4: memref<32x16xf32, #tpu.memory_space<vmem>>, %arg5: memref<32x128xf32, #tpu.memory_space<vmem>>, %arg6: memref<128x32xf32, #tpu.memory_space<vmem>>, %arg7: memref<4x128xf32, #tpu.memory_space<vmem>>, %arg8: memref<128x4xf32, #tpu.memory_space<vmem>>, %arg9: memref<1x128xf32, #tpu.memory_space<vmem>>, %arg10: memref<8x128xf32, #tpu.memory_space<vmem>>) attributes {dimension_semantics = [#tpu.dimension_semantics<parallel>], iteration_bounds = array<i64: 2>, scalar_prefetch = 0 : i64, scratch_operands = 0 : i64, tpu.core_type = #tpu.core_type<tc>, window_params = [{transform_indices = @transform_0, window_bounds = array<i64: 8, 16>}, {transform_indices = @transform_1, window_bounds = array<i64: 8, 32>}, {pipeline_mode = #tpu.pipeline_mode<synchronous>, transform_indices = @transform_2, window_bounds = array<i64: 16, 32>}, {pipeline_mode = #tpu.pipeline_mode<synchronous>, transform_indices = @transform_3, window_bounds = array<i64: 32, 16>}, {pipeline_mode = #tpu.pipeline_mode<synchronous>, transform_indices = @transform_4, window_bounds = array<i64: 32, 128>}, {pipeline_mode = #tpu.pipeline_mode<synchronous>, transform_indices = @transform_5, window_bounds = array<i64: 128, 32>}, {pipeline_mode = #tpu.pipeline_mode<synchronous>, transform_indices = @transform_6, window_bounds = array<i64: 4, 128>}, {pipeline_mode = #tpu.pipeline_mode<synchronous>, transform_indices = @transform_7, window_bounds = array<i64: 128, 4>}, {pipeline_mode = #tpu.pipeline_mode<synchronous>, transform_indices = @transform_8, window_bounds = array<i64: 1, 128>}, {transform_indices = @transform_9, window_bounds = array<i64: 8, 128>}]} {
    %c0 = arith.constant 0 : index
    %c0_0 = arith.constant 0 : index
    %0 = vector.load %arg3[%c0, %c0_0] : memref<16x32xf32, #tpu.memory_space<vmem>>, vector<16x32xf32>
    %c0_1 = arith.constant 0 : index
    %c0_2 = arith.constant 0 : index
    %1 = vector.load %arg5[%c0_1, %c0_2] : memref<32x128xf32, #tpu.memory_space<vmem>>, vector<32x128xf32>
    %cst = arith.constant dense<0.000000e+00> : vector<16x128xf32>
    %2 = tpu.matmul %0, %1, %cst {dimension_numbers = #tpu.dot_dimension_numbers<[1], [0], [0], [1], [0, 0, 1, 1], [], []>} : vector<16x32xf32>, vector<32x128xf32>, vector<16x128xf32> -> vector<16x128xf32>
    %c0_3 = arith.constant 0 : index
    %c0_4 = arith.constant 0 : index
    %3 = vector.load %arg6[%c0_3, %c0_4] : memref<128x32xf32, #tpu.memory_space<vmem>>, vector<128x32xf32>
    %c0_5 = arith.constant 0 : index
    %c0_6 = arith.constant 0 : index
    %4 = vector.load %arg4[%c0_5, %c0_6] : memref<32x16xf32, #tpu.memory_space<vmem>>, vector<32x16xf32>
    %cst_7 = arith.constant dense<0.000000e+00> : vector<128x16xf32>
    %5 = tpu.matmul %3, %4, %cst_7 {dimension_numbers = #tpu.dot_dimension_numbers<[1], [0], [0], [1], [0, 0, 1, 1], [], []>} : vector<128x32xf32>, vector<32x16xf32>, vector<128x16xf32> -> vector<128x16xf32>
    %c0_8 = arith.constant 0 : index
    %c0_9 = arith.constant 0 : index
    %6 = vector.load %arg2[%c0_8, %c0_9] : memref<8x32xf32, #tpu.memory_space<vmem>>, vector<8x32xf32>
    %c0_10 = arith.constant 0 : index
    %c0_11 = arith.constant 0 : index
    %7 = vector.load %arg5[%c0_10, %c0_11] : memref<32x128xf32, #tpu.memory_space<vmem>>, vector<32x128xf32>
    %cst_12 = arith.constant dense<0.000000e+00> : vector<8x128xf32>
    %8 = tpu.matmul %6, %7, %cst_12 {dimension_numbers = #tpu.dot_dimension_numbers<[1], [0], [0], [1], [0, 0, 1, 1], [], []>} : vector<8x32xf32>, vector<32x128xf32>, vector<8x128xf32> -> vector<8x128xf32>
    %c0_13 = arith.constant 0 : index
    %c0_14 = arith.constant 0 : index
    %9 = vector.load %arg7[%c0_13, %c0_14] : memref<4x128xf32, #tpu.memory_space<vmem>>, vector<4x128xf32>
    %cst_15 = arith.constant dense<0.000000e+00> : vector<4x16xf32>
    %10 = tpu.matmul %9, %5, %cst_15 {dimension_numbers = #tpu.dot_dimension_numbers<[1], [0], [0], [1], [0, 0, 1, 1], [], []>} : vector<4x128xf32>, vector<128x16xf32>, vector<4x16xf32> -> vector<4x16xf32>
    %c0_16 = arith.constant 0 : index
    %c0_17 = arith.constant 0 : index
    %11 = vector.load %arg8[%c0_16, %c0_17] : memref<128x4xf32, #tpu.memory_space<vmem>>, vector<128x4xf32>
    %cst_18 = arith.constant dense<0.000000e+00> : vector<8x4xf32>
    %12 = tpu.matmul %8, %11, %cst_18 {dimension_numbers = #tpu.dot_dimension_numbers<[1], [0], [0], [1], [0, 0, 1, 1], [], []>} : vector<8x128xf32>, vector<128x4xf32>, vector<8x4xf32> -> vector<8x4xf32>
    %c8_i32 = arith.constant 8 : i32
    %13 = arith.muli %arg0, %c8_i32 : i32
    %14 = tpu.iota {dimensions = array<i32: 0>} : vector<8x16xi32>
    %15 = vector.broadcast %13 : i32 to vector<8x16xi32>
    %16 = arith.addi %15, %14 : vector<8x16xi32>
    %17 = tpu.iota {dimensions = array<i32: 1>} : vector<8x16xi32>
    %c0_19 = arith.constant 0 : index
    %c0_20 = arith.constant 0 : index
    %18 = vector.load %arg1[%c0_19, %c0_20] : memref<8x16xbf16, #tpu.memory_space<vmem>>, vector<8x16xbf16>
    %cst_21 = arith.constant 0.000000e+00 : bf16
    %19 = vector.broadcast %cst_21 : bf16 to vector<8x16xbf16>
    %20 = arith.cmpf ogt, %18, %19 : vector<8x16xbf16>
    %21 = arith.cmpi eq, %16, %17 : vector<8x16xi32>
    %22 = arith.ori %20, %21 : vector<8x16xi1>
    %23 = vector.extract_strided_slice %12 {offsets = [0, 0], sizes = [8, 1], strides = [1, 1]} : vector<8x4xf32> to vector<8x1xf32>
    %24 = vector.extract_strided_slice %10 {offsets = [0, 0], sizes = [1, 16], strides = [1, 1]} : vector<4x16xf32> to vector<1x16xf32>
    %25 = vector.broadcast %23 : vector<8x1xf32> to vector<8x16xf32>
    %26 = vector.broadcast %24 : vector<1x16xf32> to vector<8x16xf32>
    %27 = arith.addf %25, %26 : vector<8x16xf32>
    %cst_22 = arith.constant 2.000000e-01 : f32
    %28 = vector.broadcast %cst_22 : f32 to vector<8x16xf32>
    %29 = arith.mulf %28, %27 : vector<8x16xf32>
    %30 = arith.maximumf %27, %29 : vector<8x16xf32>
    %cst_23 = arith.constant -1.000000e+30 : f32
    %31 = vector.broadcast %cst_23 : f32 to vector<8x16xf32>
    %32 = arith.select %22, %30, %31 : vector<8x16xi1>, vector<8x16xf32>
    %cst_24 = arith.constant dense<0xFF800000> : vector<8xf32>
    %33 = vector.multi_reduction <maximumf>, %32, %cst_24 [1] : vector<8x16xf32> to vector<8xf32>
    %34 = vector.shape_cast %33 : vector<8xf32> to vector<8x1xf32>
    %35 = vector.broadcast %34 : vector<8x1xf32> to vector<8x16xf32>
    %36 = arith.subf %32, %35 : vector<8x16xf32>
    %37 = math.exp %36 : vector<8x16xf32>
    %cst_25 = arith.constant dense<0.000000e+00> : vector<8xf32>
    %38 = vector.multi_reduction <add>, %37, %cst_25 [1] : vector<8x16xf32> to vector<8xf32>
    %39 = vector.shape_cast %38 : vector<8xf32> to vector<8x1xf32>
    %40 = vector.broadcast %39 : vector<8x1xf32> to vector<8x16xf32>
    %41 = arith.divf %37, %40 : vector<8x16xf32>
    %42 = vector.extract_strided_slice %2 {offsets = [0, 0], sizes = [16, 32], strides = [1, 1]} : vector<16x128xf32> to vector<16x32xf32>
    %cst_26 = arith.constant dense<0.000000e+00> : vector<8x32xf32>
    %43 = tpu.matmul %41, %42, %cst_26 {dimension_numbers = #tpu.dot_dimension_numbers<[1], [0], [0], [1], [0, 0, 1, 1], [], []>} : vector<8x16xf32>, vector<16x32xf32>, vector<8x32xf32> -> vector<8x32xf32>
    %c0_27 = arith.constant 0 : index
    %c0_28 = arith.constant 0 : index
    %44 = vector.load %arg9[%c0_27, %c0_28] : memref<1x128xf32, #tpu.memory_space<vmem>>, vector<1x32xf32>
    %45 = vector.broadcast %44 : vector<1x32xf32> to vector<8x32xf32>
    %46 = arith.addf %43, %45 : vector<8x32xf32>
    %c0_29 = arith.constant 0 : index
    %c0_30 = arith.constant 0 : index
    %47 = vector.load %arg10[%c0_29, %c0_30] : memref<8x128xf32, #tpu.memory_space<vmem>>, vector<8x32xf32>
    tpu.vector_store %arg10[%c0_29, %c0_30], %46 {strides = array<i32>} : memref<8x128xf32, #tpu.memory_space<vmem>>, vector<8x32xf32>,
    %48 = vector.extract_strided_slice %12 {offsets = [0, 1], sizes = [8, 1], strides = [1, 1]} : vector<8x4xf32> to vector<8x1xf32>
    %49 = vector.extract_strided_slice %10 {offsets = [1, 0], sizes = [1, 16], strides = [1, 1]} : vector<4x16xf32> to vector<1x16xf32>
    %50 = vector.broadcast %48 : vector<8x1xf32> to vector<8x16xf32>
    %51 = vector.broadcast %49 : vector<1x16xf32> to vector<8x16xf32>
    %52 = arith.addf %50, %51 : vector<8x16xf32>
    %cst_31 = arith.constant 2.000000e-01 : f32
    %53 = vector.broadcast %cst_31 : f32 to vector<8x16xf32>
    %54 = arith.mulf %53, %52 : vector<8x16xf32>
    %55 = arith.maximumf %52, %54 : vector<8x16xf32>
    %cst_32 = arith.constant -1.000000e+30 : f32
    %56 = vector.broadcast %cst_32 : f32 to vector<8x16xf32>
    %57 = arith.select %22, %55, %56 : vector<8x16xi1>, vector<8x16xf32>
    %cst_33 = arith.constant dense<0xFF800000> : vector<8xf32>
    %58 = vector.multi_reduction <maximumf>, %57, %cst_33 [1] : vector<8x16xf32> to vector<8xf32>
    %59 = vector.shape_cast %58 : vector<8xf32> to vector<8x1xf32>
    %60 = vector.broadcast %59 : vector<8x1xf32> to vector<8x16xf32>
    %61 = arith.subf %57, %60 : vector<8x16xf32>
    %62 = math.exp %61 : vector<8x16xf32>
    %cst_34 = arith.constant dense<0.000000e+00> : vector<8xf32>
    %63 = vector.multi_reduction <add>, %62, %cst_34 [1] : vector<8x16xf32> to vector<8xf32>
    %64 = vector.shape_cast %63 : vector<8xf32> to vector<8x1xf32>
    %65 = vector.broadcast %64 : vector<8x1xf32> to vector<8x16xf32>
    %66 = arith.divf %62, %65 : vector<8x16xf32>
    %67 = vector.extract_strided_slice %2 {offsets = [0, 32], sizes = [16, 32], strides = [1, 1]} : vector<16x128xf32> to vector<16x32xf32>
    %cst_35 = arith.constant dense<0.000000e+00> : vector<8x32xf32>
    %68 = tpu.matmul %66, %67, %cst_35 {dimension_numbers = #tpu.dot_dimension_numbers<[1], [0], [0], [1], [0, 0, 1, 1], [], []>} : vector<8x16xf32>, vector<16x32xf32>, vector<8x32xf32> -> vector<8x32xf32>
    %c0_36 = arith.constant 0 : index
    %c32 = arith.constant 32 : index
    %69 = vector.load %arg9[%c0_36, %c32] : memref<1x128xf32, #tpu.memory_space<vmem>>, vector<1x32xf32>
    %70 = vector.broadcast %69 : vector<1x32xf32> to vector<8x32xf32>
    %71 = arith.addf %68, %70 : vector<8x32xf32>
    %c0_37 = arith.constant 0 : index
    %c32_38 = arith.constant 32 : index
    %72 = vector.load %arg10[%c0_37, %c32_38] : memref<8x128xf32, #tpu.memory_space<vmem>>, vector<8x32xf32>
    tpu.vector_store %arg10[%c0_37, %c32_38], %71 {strides = array<i32>} : memref<8x128xf32, #tpu.memory_space<vmem>>, vector<8x32xf32>,
    %73 = vector.extract_strided_slice %12 {offsets = [0, 2], sizes = [8, 1], strides = [1, 1]} : vector<8x4xf32> to vector<8x1xf32>
    %74 = vector.extract_strided_slice %10 {offsets = [2, 0], sizes = [1, 16], strides = [1, 1]} : vector<4x16xf32> to vector<1x16xf32>
    %75 = vector.broadcast %73 : vector<8x1xf32> to vector<8x16xf32>
    %76 = vector.broadcast %74 : vector<1x16xf32> to vector<8x16xf32>
    %77 = arith.addf %75, %76 : vector<8x16xf32>
    %cst_39 = arith.constant 2.000000e-01 : f32
    %78 = vector.broadcast %cst_39 : f32 to vector<8x16xf32>
    %79 = arith.mulf %78, %77 : vector<8x16xf32>
    %80 = arith.maximumf %77, %79 : vector<8x16xf32>
    %cst_40 = arith.constant -1.000000e+30 : f32
    %81 = vector.broadcast %cst_40 : f32 to vector<8x16xf32>
    %82 = arith.select %22, %80, %81 : vector<8x16xi1>, vector<8x16xf32>
    %cst_41 = arith.constant dense<0xFF800000> : vector<8xf32>
    %83 = vector.multi_reduction <maximumf>, %82, %cst_41 [1] : vector<8x16xf32> to vector<8xf32>
    %84 = vector.shape_cast %83 : vector<8xf32> to vector<8x1xf32>
    %85 = vector.broadcast %84 : vector<8x1xf32> to vector<8x16xf32>
    %86 = arith.subf %82, %85 : vector<8x16xf32>
    %87 = math.exp %86 : vector<8x16xf32>
    %cst_42 = arith.constant dense<0.000000e+00> : vector<8xf32>
    %88 = vector.multi_reduction <add>, %87, %cst_42 [1] : vector<8x16xf32> to vector<8xf32>
    %89 = vector.shape_cast %88 : vector<8xf32> to vector<8x1xf32>
    %90 = vector.broadcast %89 : vector<8x1xf32> to vector<8x16xf32>
    %91 = arith.divf %87, %90 : vector<8x16xf32>
    %92 = vector.extract_strided_slice %2 {offsets = [0, 64], sizes = [16, 32], strides = [1, 1]} : vector<16x128xf32> to vector<16x32xf32>
    %cst_43 = arith.constant dense<0.000000e+00> : vector<8x32xf32>
    %93 = tpu.matmul %91, %92, %cst_43 {dimension_numbers = #tpu.dot_dimension_numbers<[1], [0], [0], [1], [0, 0, 1, 1], [], []>} : vector<8x16xf32>, vector<16x32xf32>, vector<8x32xf32> -> vector<8x32xf32>
    %c0_44 = arith.constant 0 : index
    %c64 = arith.constant 64 : index
    %94 = vector.load %arg9[%c0_44, %c64] : memref<1x128xf32, #tpu.memory_space<vmem>>, vector<1x32xf32>
    %95 = vector.broadcast %94 : vector<1x32xf32> to vector<8x32xf32>
    %96 = arith.addf %93, %95 : vector<8x32xf32>
    %c0_45 = arith.constant 0 : index
    %c64_46 = arith.constant 64 : index
    %97 = vector.load %arg10[%c0_45, %c64_46] : memref<8x128xf32, #tpu.memory_space<vmem>>, vector<8x32xf32>
    tpu.vector_store %arg10[%c0_45, %c64_46], %96 {strides = array<i32>} : memref<8x128xf32, #tpu.memory_space<vmem>>, vector<8x32xf32>,
    %98 = vector.extract_strided_slice %12 {offsets = [0, 3], sizes = [8, 1], strides = [1, 1]} : vector<8x4xf32> to vector<8x1xf32>
    %99 = vector.extract_strided_slice %10 {offsets = [3, 0], sizes = [1, 16], strides = [1, 1]} : vector<4x16xf32> to vector<1x16xf32>
    %100 = vector.broadcast %98 : vector<8x1xf32> to vector<8x16xf32>
    %101 = vector.broadcast %99 : vector<1x16xf32> to vector<8x16xf32>
    %102 = arith.addf %100, %101 : vector<8x16xf32>
    %cst_47 = arith.constant 2.000000e-01 : f32
    %103 = vector.broadcast %cst_47 : f32 to vector<8x16xf32>
    %104 = arith.mulf %103, %102 : vector<8x16xf32>
    %105 = arith.maximumf %102, %104 : vector<8x16xf32>
    %cst_48 = arith.constant -1.000000e+30 : f32
    %106 = vector.broadcast %cst_48 : f32 to vector<8x16xf32>
    %107 = arith.select %22, %105, %106 : vector<8x16xi1>, vector<8x16xf32>
    %cst_49 = arith.constant dense<0xFF800000> : vector<8xf32>
    %108 = vector.multi_reduction <maximumf>, %107, %cst_49 [1] : vector<8x16xf32> to vector<8xf32>
    %109 = vector.shape_cast %108 : vector<8xf32> to vector<8x1xf32>
    %110 = vector.broadcast %109 : vector<8x1xf32> to vector<8x16xf32>
    %111 = arith.subf %107, %110 : vector<8x16xf32>
    %112 = math.exp %111 : vector<8x16xf32>
    %cst_50 = arith.constant dense<0.000000e+00> : vector<8xf32>
    %113 = vector.multi_reduction <add>, %112, %cst_50 [1] : vector<8x16xf32> to vector<8xf32>
    %114 = vector.shape_cast %113 : vector<8xf32> to vector<8x1xf32>
    %115 = vector.broadcast %114 : vector<8x1xf32> to vector<8x16xf32>
    %116 = arith.divf %112, %115 : vector<8x16xf32>
    %117 = vector.extract_strided_slice %2 {offsets = [0, 96], sizes = [16, 32], strides = [1, 1]} : vector<16x128xf32> to vector<16x32xf32>
    %cst_51 = arith.constant dense<0.000000e+00> : vector<8x32xf32>
    %118 = tpu.matmul %116, %117, %cst_51 {dimension_numbers = #tpu.dot_dimension_numbers<[1], [0], [0], [1], [0, 0, 1, 1], [], []>} : vector<8x16xf32>, vector<16x32xf32>, vector<8x32xf32> -> vector<8x32xf32>
    %c0_52 = arith.constant 0 : index
    %c96 = arith.constant 96 : index
    %119 = vector.load %arg9[%c0_52, %c96] : memref<1x128xf32, #tpu.memory_space<vmem>>, vector<1x32xf32>
    %120 = vector.broadcast %119 : vector<1x32xf32> to vector<8x32xf32>
    %121 = arith.addf %118, %120 : vector<8x32xf32>
    %c0_53 = arith.constant 0 : index
    %c96_54 = arith.constant 96 : index
    %122 = vector.load %arg10[%c0_53, %c96_54] : memref<8x128xf32, #tpu.memory_space<vmem>>, vector<8x32xf32>
    tpu.vector_store %arg10[%c0_53, %c96_54], %121 {strides = array<i32>} : memref<8x128xf32, #tpu.memory_space<vmem>>, vector<8x32xf32>,
    return
  }
  func.func @transform_0(%arg0: i32) -> (i32, i32) {
    %c0_i32 = arith.constant 0 : i32
    %c0_i32_0 = arith.constant 0 : i32
    return %arg0, %c0_i32 : i32, i32
  }
  func.func @transform_1(%arg0: i32) -> (i32, i32) {
    %c0_i32 = arith.constant 0 : i32
    %c0_i32_0 = arith.constant 0 : i32
    return %arg0, %c0_i32 : i32, i32
  }
  func.func @transform_2(%arg0: i32) -> (i32, i32) {
    %c0_i32 = arith.constant 0 : i32
    %c0_i32_0 = arith.constant 0 : i32
    %c0_i32_1 = arith.constant 0 : i32
    return %c0_i32, %c0_i32_0 : i32, i32
  }
  func.func @transform_3(%arg0: i32) -> (i32, i32) {
    %c0_i32 = arith.constant 0 : i32
    %c0_i32_0 = arith.constant 0 : i32
    %c0_i32_1 = arith.constant 0 : i32
    return %c0_i32, %c0_i32_0 : i32, i32
  }
  func.func @transform_4(%arg0: i32) -> (i32, i32) {
    %c0_i32 = arith.constant 0 : i32
    %c0_i32_0 = arith.constant 0 : i32
    %c0_i32_1 = arith.constant 0 : i32
    return %c0_i32, %c0_i32_0 : i32, i32
  }
  func.func @transform_5(%arg0: i32) -> (i32, i32) {
    %c0_i32 = arith.constant 0 : i32
    %c0_i32_0 = arith.constant 0 : i32
    %c0_i32_1 = arith.constant 0 : i32
    return %c0_i32, %c0_i32_0 : i32, i32
  }
  func.func @transform_6(%arg0: i32) -> (i32, i32) {
    %c0_i32 = arith.constant 0 : i32
    %c0_i32_0 = arith.constant 0 : i32
    %c0_i32_1 = arith.constant 0 : i32
    return %c0_i32, %c0_i32_0 : i32, i32
  }
  func.func @transform_7(%arg0: i32) -> (i32, i32) {
    %c0_i32 = arith.constant 0 : i32
    %c0_i32_0 = arith.constant 0 : i32
    %c0_i32_1 = arith.constant 0 : i32
    return %c0_i32, %c0_i32_0 : i32, i32
  }
  func.func @transform_8(%arg0: i32) -> (i32, i32) {
    %c0_i32 = arith.constant 0 : i32
    %c0_i32_0 = arith.constant 0 : i32
    %c0_i32_1 = arith.constant 0 : i32
    return %c0_i32, %c0_i32_0 : i32, i32
  }
  func.func @transform_9(%arg0: i32) -> (i32, i32) {
    %c0_i32 = arith.constant 0 : i32
    %c0_i32_0 = arith.constant 0 : i32
    return %arg0, %c0_i32 : i32, i32
  }
}

</mosaic_0001>

<llo_original>
// kernel: tpu_custom_call.1
$region0: #{tpu_custom_call.1}
  #allocation0 [shape = 'u32[]', space=smem, size = 0x4, offset = 0x4, fixed_abs, tag = 'smem constant byte address 0x4 - core index']
  #allocation1 [shape = 'u32[144,128]{1,0:T(1,128)}', space=vmem, size = 0x12000, scoped, tag = 'internal scratch']
  %s0 = inlined_call_operand.vmem [shape: bf16[16,16], index: 0, kind: input, shape index: {}]
  %s1 = inlined_call_operand.vmem [shape: f32[16,32], index: 1, kind: input, shape index: {}]
  %s2 = inlined_call_operand.vmem [shape: f32[16,32], index: 2, kind: input, shape index: {}]
  %s3 = inlined_call_operand.vmem [shape: f32[32,16], index: 3, kind: input, shape index: {}]
  %s4 = inlined_call_operand.vmem [shape: f32[32,128], index: 4, kind: input, shape index: {}]
  %s5 = inlined_call_operand.vmem [shape: f32[128,32], index: 5, kind: input, shape index: {}]
  %s6 = inlined_call_operand.vmem [shape: f32[4,128], index: 6, kind: input, shape index: {}]
  %s7 = inlined_call_operand.vmem [shape: f32[128,4], index: 7, kind: input, shape index: {}]
  %s8 = inlined_call_operand.vmem [shape: f32[1,128], index: 8, kind: input, shape index: {}]
  %s9 = inlined_call_operand.hbm [shape: f32[16,128], index: 9, kind: output, shape index: {}]
  %s10 = sld [smem:[#allocation0]]
  $region69: #{tpu_custom_call.1} parent=0
    _
  %s12 = ssub.s32 1, %s10
  %s13 = scalar_select 0, %s12, %s10
  $region1: #{tpu_custom_call.1} parent=0
    #allocation2 [shape = 'u8[8192]{0}', space=vmem, size = 0x2000, scoped, tag = 'output window, operand 0']
    #allocation3 [shape = 's32[2]{0}', space=sflag, size = 0x8, scoped, tag = 'scoped memory for tpu_custom_call.1']
    %14 = vsyncpa [#allocation3], 0
    %s15 = scalar_lea.sflag [#allocation3], 1
    %16 = vsyncpa %s15, 0
    loop: start=0, step=1, limit=4
    $region2: #{tpu_custom_call.1} parent=1 // loop_pre_header
      _
    $region3: #{tpu_custom_call.1} parent=1 // loop_header
      %s18 = sphi 0, %s22
      %p19 = scmp.ge.s32.totalorder %s18, 4
      %s28 = sphi 0, %s30
      %s31 = sphi 0, %s28
      %s32 = sphi 0, %s31
      %s48 = sphi 0, %s32
      %s54 = sphi 0, %s56
      %s57 = sphi 0, %s54
      %s58 = sphi 0, %s57
      %s74 = sphi 0, %s58
      %s78 = sphi 0, %s78
      %s80 = sphi 0, %s78
      %s81 = sphi 0, %s80
      %s95 = sphi 0, %s81
      %s99 = sphi 0, %s99
      %s101 = sphi 0, %s99
      %s102 = sphi 0, %s101
      %s116 = sphi 0, %s102
      %s120 = sphi 0, %s120
      %s122 = sphi 0, %s120
      %s123 = sphi 0, %s122
      %s137 = sphi 0, %s123
      %s141 = sphi 0, %s141
      %s143 = sphi 0, %s141
      %s144 = sphi 0, %s143
      %s158 = sphi 0, %s144
      %s162 = sphi 0, %s162
      %s164 = sphi 0, %s162
      %s165 = sphi 0, %s164
      %s179 = sphi 0, %s165
      %s183 = sphi 0, %s183
      %s185 = sphi 0, %s183
      %s186 = sphi 0, %s185
      %s200 = sphi 0, %s186
      %s204 = sphi 0, %s204
      %s206 = sphi 0, %s204
      %s207 = sphi 0, %s206
      %s221 = sphi 0, %s207
      %s227 = sphi 0, %s229
      %s230 = sphi 0, %s227
      %s231 = sphi 0, %s230
      %s247 = sphi 0, %s231
    $region4: #{tpu_custom_call.1} parent=1 // loop_header_branch
      %21 = sbr.rel (%p19) target = $region8
    $region5: #{tpu_custom_call.1} parent=1 // loop_body
      %s23 = ssub.s32 %s18, 1
      %s24 = ssub.s32 %s18, 2
      %s25 = sadd.s32 %s18, 1
      %s26 = ssub.s32 %s18, %s25
      %p27 = scmp.eq.s32.totalorder %s26, 0
      %s29 = sadd.s32 %s28, 1
      %s30 = scalar_select %p27, %s28, %s29
      %p33 = pneg %p27
      %p34 = scmp.eq.s32.totalorder %s18, 1
      %p35 = por %p33, %p34
      %p36 = scmp.ne.s32.totalorder %s28, %s31
      %p37 = scmp.eq.s32.totalorder %s18, 0
      %p38 = por %p36, %p37
      %p39 = scmp.ne.s32.totalorder %s28, %s31
      %p40 = scmp.eq.s32.totalorder %s23, 1
      %p41 = por %p39, %p40
      %p42 = scmp.ne.s32.totalorder %s31, %s32
      %p43 = scmp.eq.s32.totalorder %s23, 0
      %p44 = por %p42, %p43
      %p45 = scmp.ne.s32.totalorder %s31, %s32
      %p46 = scmp.eq.s32.totalorder %s24, 1
      %p47 = por %p45, %p46
      %p49 = scmp.ne.s32.totalorder %s32, %s48
      %p50 = scmp.eq.s32.totalorder %s24, 0
      %p51 = por %p49, %p50
      %s52 = ssub.s32 %s18, %s25
      %p53 = scmp.eq.s32.totalorder %s52, 0
      %s55 = sadd.s32 %s54, 1
      %s56 = scalar_select %p53, %s54, %s55
      %p59 = pneg %p53
      %p60 = scmp.eq.s32.totalorder %s18, 1
      %p61 = por %p59, %p60
      %p62 = scmp.ne.s32.totalorder %s54, %s57
      %p63 = scmp.eq.s32.totalorder %s18, 0
      %p64 = por %p62, %p63
      %p65 = scmp.ne.s32.totalorder %s54, %s57
      %p66 = scmp.eq.s32.totalorder %s23, 1
      %p67 = por %p65, %p66
      %p68 = scmp.ne.s32.totalorder %s57, %s58
      %p69 = scmp.eq.s32.totalorder %s23, 0
      %p70 = por %p68, %p69
      %p71 = scmp.ne.s32.totalorder %s57, %s58
      %p72 = scmp.eq.s32.totalorder %s24, 1
      %p73 = por %p71, %p72
      %p75 = scmp.ne.s32.totalorder %s58, %s74
      %p76 = scmp.eq.s32.totalorder %s24, 0
      %p77 = por %p75, %p76
      %s79 = sadd.s32 %s78, 1
      %p82 = scmp.eq.s32.totalorder %s18, 1
      %p83 = scmp.ne.s32.totalorder %s78, %s80
      %p84 = scmp.eq.s32.totalorder %s18, 0
      %p85 = por %p83, %p84
      %p86 = scmp.ne.s32.totalorder %s78, %s80
      %p87 = scmp.eq.s32.totalorder %s23, 1
      %p88 = por %p86, %p87
      %p89 = scmp.ne.s32.totalorder %s80, %s81
      %p90 = scmp.eq.s32.totalorder %s23, 0
      %p91 = por %p89, %p90
      %p92 = scmp.ne.s32.totalorder %s80, %s81
      %p93 = scmp.eq.s32.totalorder %s24, 1
      %p94 = por %p92, %p93
      %p96 = scmp.ne.s32.totalorder %s81, %s95
      %p97 = scmp.eq.s32.totalorder %s24, 0
      %p98 = por %p96, %p97
      %s100 = sadd.s32 %s99, 1
      %p103 = scmp.eq.s32.totalorder %s18, 1
      %p104 = scmp.ne.s32.totalorder %s99, %s101
      %p105 = scmp.eq.s32.totalorder %s18, 0
      %p106 = por %p104, %p105
      %p107 = scmp.ne.s32.totalorder %s99, %s101
      %p108 = scmp.eq.s32.totalorder %s23, 1
      %p109 = por %p107, %p108
      %p110 = scmp.ne.s32.totalorder %s101, %s102
      %p111 = scmp.eq.s32.totalorder %s23, 0
      %p112 = por %p110, %p111
      %p113 = scmp.ne.s32.totalorder %s101, %s102
      %p114 = scmp.eq.s32.totalorder %s24, 1
      %p115 = por %p113, %p114
      %p117 = scmp.ne.s32.totalorder %s102, %s116
      %p118 = scmp.eq.s32.totalorder %s24, 0
      %p119 = por %p117, %p118
      %s121 = sadd.s32 %s120, 1
      %p124 = scmp.eq.s32.totalorder %s18, 1
      %p125 = scmp.ne.s32.totalorder %s120, %s122
      %p126 = scmp.eq.s32.totalorder %s18, 0
      %p127 = por %p125, %p126
      %p128 = scmp.ne.s32.totalorder %s120, %s122
      %p129 = scmp.eq.s32.totalorder %s23, 1
      %p130 = por %p128, %p129
      %p131 = scmp.ne.s32.totalorder %s122, %s123
      %p132 = scmp.eq.s32.totalorder %s23, 0
      %p133 = por %p131, %p132
      %p134 = scmp.ne.s32.totalorder %s122, %s123
      %p135 = scmp.eq.s32.totalorder %s24, 1
      %p136 = por %p134, %p135
      %p138 = scmp.ne.s32.totalorder %s123, %s137
      %p139 = scmp.eq.s32.totalorder %s24, 0
      %p140 = por %p138, %p139
      %s142 = sadd.s32 %s141, 1
      %p145 = scmp.eq.s32.totalorder %s18, 1
      %p146 = scmp.ne.s32.totalorder %s141, %s143
      %p147 = scmp.eq.s32.totalorder %s18, 0
      %p148 = por %p146, %p147
      %p149 = scmp.ne.s32.totalorder %s141, %s143
      %p150 = scmp.eq.s32.totalorder %s23, 1
      %p151 = por %p149, %p150
      %p152 = scmp.ne.s32.totalorder %s143, %s144
      %p153 = scmp.eq.s32.totalorder %s23, 0
      %p154 = por %p152, %p153
      %p155 = scmp.ne.s32.totalorder %s143, %s144
      %p156 = scmp.eq.s32.totalorder %s24, 1
      %p157 = por %p155, %p156
      %p159 = scmp.ne.s32.totalorder %s144, %s158
      %p160 = scmp.eq.s32.totalorder %s24, 0
      %p161 = por %p159, %p160
      %s163 = sadd.s32 %s162, 1
      %p166 = scmp.eq.s32.totalorder %s18, 1
      %p167 = scmp.ne.s32.totalorder %s162, %s164
      %p168 = scmp.eq.s32.totalorder %s18, 0
      %p169 = por %p167, %p168
      %p170 = scmp.ne.s32.totalorder %s162, %s164
      %p171 = scmp.eq.s32.totalorder %s23, 1
      %p172 = por %p170, %p171
      %p173 = scmp.ne.s32.totalorder %s164, %s165
      %p174 = scmp.eq.s32.totalorder %s23, 0
      %p175 = por %p173, %p174
      %p176 = scmp.ne.s32.totalorder %s164, %s165
      %p177 = scmp.eq.s32.totalorder %s24, 1
      %p178 = por %p176, %p177
      %p180 = scmp.ne.s32.totalorder %s165, %s179
      %p181 = scmp.eq.s32.totalorder %s24, 0
      %p182 = por %p180, %p181
      %s184 = sadd.s32 %s183, 1
      %p187 = scmp.eq.s32.totalorder %s18, 1
      %p188 = scmp.ne.s32.totalorder %s183, %s185
      %p189 = scmp.eq.s32.totalorder %s18, 0
      %p190 = por %p188, %p189
      %p191 = scmp.ne.s32.totalorder %s183, %s185
      %p192 = scmp.eq.s32.totalorder %s23, 1
      %p193 = por %p191, %p192
      %p194 = scmp.ne.s32.totalorder %s185, %s186
      %p195 = scmp.eq.s32.totalorder %s23, 0
      %p196 = por %p194, %p195
      %p197 = scmp.ne.s32.totalorder %s185, %s186
      %p198 = scmp.eq.s32.totalorder %s24, 1
      %p199 = por %p197, %p198
      %p201 = scmp.ne.s32.totalorder %s186, %s200
      %p202 = scmp.eq.s32.totalorder %s24, 0
      %p203 = por %p201, %p202
      %s205 = sadd.s32 %s204, 1
      %p208 = scmp.eq.s32.totalorder %s18, 1
      %p209 = scmp.ne.s32.totalorder %s204, %s206
      %p210 = scmp.eq.s32.totalorder %s18, 0
      %p211 = por %p209, %p210
      %p212 = scmp.ne.s32.totalorder %s204, %s206
      %p213 = scmp.eq.s32.totalorder %s23, 1
      %p214 = por %p212, %p213
      %p215 = scmp.ne.s32.totalorder %s206, %s207
      %p216 = scmp.eq.s32.totalorder %s23, 0
      %p217 = por %p215, %p216
      %p218 = scmp.ne.s32.totalorder %s206, %s207
      %p219 = scmp.eq.s32.totalorder %s24, 1
      %p220 = por %p218, %p219
      %p222 = scmp.ne.s32.totalorder %s207, %s221
      %p223 = scmp.eq.s32.totalorder %s24, 0
      %p224 = por %p222, %p223
      %s225 = ssub.s32 %s18, %s25
      %p226 = scmp.eq.s32.totalorder %s225, 0
      %s228 = sadd.s32 %s227, 1
      %s229 = scalar_select %p226, %s227, %s228
      %p232 = pneg %p226
      %p233 = scmp.eq.s32.totalorder %s18, 1
      %p234 = por %p232, %p233
      %p235 = scmp.ne.s32.totalorder %s227, %s230
      %p236 = scmp.eq.s32.totalorder %s18, 0
      %p237 = por %p235, %p236
      %p238 = scmp.ne.s32.totalorder %s227, %s230
      %p239 = scmp.eq.s32.totalorder %s23, 1
      %p240 = por %p238, %p239
      %p241 = scmp.ne.s32.totalorder %s230, %s231
      %p242 = scmp.eq.s32.totalorder %s23, 0
      %p243 = por %p241, %p242
      %p244 = scmp.ne.s32.totalorder %s230, %s231
      %p245 = scmp.eq.s32.totalorder %s24, 1
      %p246 = por %p244, %p245
      %p248 = scmp.ne.s32.totalorder %s231, %s247
      %p249 = scmp.eq.s32.totalorder %s24, 0
      %p250 = por %p248, %p249
      %p251 = scmp.le.s32.totalorder 1, %s18
      %p252 = scmp.lt.s32.totalorder %s18, 3
      %p253 = pnand %p251, %p252
      %p254 = pneg %p253
      // Predicated region
      $region9: #{tpu_custom_call.1} parent=5 // pred_check
        _
      $region10: #{tpu_custom_call.1} parent=5 // pred_check_branch
        %256 = sbr.rel (%p253) target = $region12
      $region11: #{tpu_custom_call.1} parent=5 // pred_region
        %s257 = ssub.s32 %s18, 1
        // Predicated region
        $region13: #{tpu_custom_call.1} parent=11 // pred_check
          %p258 = pneg %p91
        $region14: #{tpu_custom_call.1} parent=11 // pred_check_branch
          %260 = sbr.rel (%p258) target = $region16
        $region15: #{tpu_custom_call.1} parent=11 // pred_region
          _
        $region16: #{tpu_custom_call.1} parent=11 // pred_fallthru
          _
        // Predicated region
        $region17: #{tpu_custom_call.1} parent=11 // pred_check
          %p261 = pneg %p112
        $region18: #{tpu_custom_call.1} parent=11 // pred_check_branch
          %263 = sbr.rel (%p261) target = $region20
        $region19: #{tpu_custom_call.1} parent=11 // pred_region
          _
        $region20: #{tpu_custom_call.1} parent=11 // pred_fallthru
          _
        // Predicated region
        $region21: #{tpu_custom_call.1} parent=11 // pred_check
          %p264 = pneg %p133
        $region22: #{tpu_custom_call.1} parent=11 // pred_check_branch
          %266 = sbr.rel (%p264) target = $region24
        $region23: #{tpu_custom_call.1} parent=11 // pred_region
          _
        $region24: #{tpu_custom_call.1} parent=11 // pred_fallthru
          _
        // Predicated region
        $region25: #{tpu_custom_call.1} parent=11 // pred_check
          %p267 = pneg %p154
        $region26: #{tpu_custom_call.1} parent=11 // pred_check_branch
          %269 = sbr.rel (%p267) target = $region28
        $region27: #{tpu_custom_call.1} parent=11 // pred_region
          _
        $region28: #{tpu_custom_call.1} parent=11 // pred_fallthru
          _
        // Predicated region
        $region29: #{tpu_custom_call.1} parent=11 // pred_check
          %p270 = pneg %p175
        $region30: #{tpu_custom_call.1} parent=11 // pred_check_branch
          %272 = sbr.rel (%p270) target = $region32
        $region31: #{tpu_custom_call.1} parent=11 // pred_region
          _
        $region32: #{tpu_custom_call.1} parent=11 // pred_fallthru
          _
        // Predicated region
        $region33: #{tpu_custom_call.1} parent=11 // pred_check
          %p273 = pneg %p196
        $region34: #{tpu_custom_call.1} parent=11 // pred_check_branch
          %275 = sbr.rel (%p273) target = $region36
        $region35: #{tpu_custom_call.1} parent=11 // pred_region
          _
        $region36: #{tpu_custom_call.1} parent=11 // pred_fallthru
          _
        // Predicated region
        $region37: #{tpu_custom_call.1} parent=11 // pred_check
          %p276 = pneg %p217
        $region38: #{tpu_custom_call.1} parent=11 // pred_check_branch
          %278 = sbr.rel (%p276) target = $region40
        $region39: #{tpu_custom_call.1} parent=11 // pred_region
          _
        $region40: #{tpu_custom_call.1} parent=11 // pred_fallthru
          _
      $region12: #{tpu_custom_call.1} parent=5 // pred_fallthru
        _
      %p279 = scmp.lt.s32.totalorder %s18, 2
      // Predicated region
      $region41: #{tpu_custom_call.1} parent=5 // pred_check
        %p280 = pneg %p279
      $region42: #{tpu_custom_call.1} parent=5 // pred_check_branch
        %282 = sbr.rel (%p280) target = $region44
      $region43: #{tpu_custom_call.1} parent=5 // pred_region
        // Predicated region
        $region45: #{tpu_custom_call.1} parent=43 // pred_check
          %p283 = pneg %p38
        $region46: #{tpu_custom_call.1} parent=43 // pred_check_branch
          %285 = sbr.rel (%p283) target = $region48
        $region47: #{tpu_custom_call.1} parent=43 // pred_region
          %p286 = scmp.lt.s32.totalorder %s18, 1
          %s287 = scalar_select %p286, %s18, 1
          %s288 = smul.addr %s287, 4
          %s289 = scalar_lea.vmem %s0, %s288
        $region48: #{tpu_custom_call.1} parent=43 // pred_fallthru
          _
        // Predicated region
        $region49: #{tpu_custom_call.1} parent=43 // pred_check
          %p290 = pneg %p64
        $region50: #{tpu_custom_call.1} parent=43 // pred_check_branch
          %292 = sbr.rel (%p290) target = $region52
        $region51: #{tpu_custom_call.1} parent=43 // pred_region
          %p293 = scmp.lt.s32.totalorder %s18, 1
          %s294 = scalar_select %p293, %s18, 1
          %s295 = smul.addr %s294, 8
          %s296 = scalar_lea.vmem %s1, %s295
        $region52: #{tpu_custom_call.1} parent=43 // pred_fallthru
          _
      $region44: #{tpu_custom_call.1} parent=5 // pred_fallthru
        _
      %p297 = scmp.le.s32.totalorder 1, %s18
      %p298 = scmp.lt.s32.totalorder %s18, 3
      %p299 = pnand %p297, %p298
      %p300 = pneg %p299
      // Predicated region
      $region53: #{tpu_custom_call.1} parent=5 // pred_check
        _
      $region54: #{tpu_custom_call.1} parent=5 // pred_check_branch
        %302 = sbr.rel (%p299) target = $region56
      $region55: #{tpu_custom_call.1} parent=5 // pred_region
        %s303 = ssub.s32 %s18, 1
        %p304 = scmp.lt.s32.totalorder %s23, 1
        %s305 = scalar_select %p304, %s23, 1
        %s306 = smul.addr %s305, 4
        %s307 = scalar_lea.vmem %s0, %s306
        %p308 = pneg %p44
        %p309 = pneg %p41
        %p310 = scmp.lt.s32.totalorder %s23, 1
        %s311 = scalar_select %p310, %s23, 1
        %s312 = smul.addr %s311, 8
        %s313 = scalar_lea.vmem %s1, %s312
        %p314 = pneg %p70
        %p315 = pneg %p67
        %p316 = pneg %p91
        %p317 = pneg %p88
        %p318 = pneg %p112
        %p319 = pneg %p109
        %p320 = pneg %p133
        %p321 = pneg %p130
        %p322 = pneg %p154
        %p323 = pneg %p151
        %p324 = pneg %p175
        %p325 = pneg %p172
        %p326 = pneg %p196
        %p327 = pneg %p193
        %p328 = pneg %p217
        %p329 = pneg %p214
        %p330 = pneg %p243
        %p331 = pneg %p240
        %s332 = sand.u32 %s230, 1
        %s333 = scalar_lea.sflag [#allocation3], %s332
        %s334 = sand.u32 %s230, 1
        %s335 = smul.addr %s334, 8
        %s336 = scalar_lea.vmem [#allocation2], %s335
        %p337 = scmp.lt.s32.totalorder %s23, 1
        %s338 = scalar_select %p337, %s23, 1
        %s339 = smul.addr %s338, 4
        %s340 = scalar_lea.vmem %s0, %s339
        %p341 = scmp.lt.s32.totalorder %s23, 1
        %s342 = scalar_select %p341, %s23, 1
        %s343 = smul.addr %s342, 8
        %s344 = scalar_lea.vmem %s1, %s343
        %v348 = vld [vmem:[%s2] sm:$0xff]
        %v349 = vld [vmem:[%s2 + $0x8] sm:$0xff]
        %v350 = vld [vmem:[%s4] sm:$0xff]
        %v351 = vld [vmem:[%s4 + $0x8] sm:$0xff]
        %v352 = vld [vmem:[%s4 + $0x10] sm:$0xff]
        %v353 = vld [vmem:[%s4 + $0x18] sm:$0xff]
        %vm354 = vcmask 261120
        %v356 = vsel %vm354, %v348, 0
        %v359 = vsel %vm354, %v349, 0
        %361 = vmatprep.subr.mxu0 0.0
        %362 = vmatpush1.msra.mxu0 %v350
        %363 = vmatprep.subr.mxu0 0.0
        %364 = vmatpush1.msra.mxu0 %v351
        %365 = vmatprep.subr.mxu0 0.0
        %366 = vmatpush1.msra.mxu0 %v352
        %367 = vmatprep.subr.mxu0 0.0
        %368 = vmatpush1.msra.mxu0 %v353
        %369 = vmatprep.subr.mxu0 0.0
        %370 = vmatpush1.msra.mxu0 0.0
        %371 = vmatprep.subr.mxu0 0.0
        %372 = vmatpush1.msra.mxu0 0.0
        %373 = vmatprep.subr.mxu0 0.0
        %374 = vmatpush1.msra.mxu0 0.0
        %375 = vmatprep.subr.mxu0 0.0
        %376 = vmatpush1.msra.mxu0 0.0
        %377 = vmatprep.subr.mxu0 0.0
        %378 = vmatpush1.msra.mxu0 0.0
        %379 = vmatprep.subr.mxu0 0.0
        %380 = vmatpush1.msra.mxu0 0.0
        %381 = vmatprep.subr.mxu0 0.0
        %382 = vmatpush1.msra.mxu0 0.0
        %383 = vmatprep.subr.mxu0 0.0
        %384 = vmatpush1.msra.mxu0 0.0
        %385 = vmatprep.subr.mxu0 0.0
        %386 = vmatpush1.msra.mxu0 0.0
        %387 = vmatprep.subr.mxu0 0.0
        %388 = vmatpush1.msra.mxu0 0.0
        %389 = vmatprep.subr.mxu0 0.0
        %390 = vmatpush1.msra.mxu0 0.0
        %391 = vmatprep.subr.mxu0 0.0
        %392 = vmatpush1.msra.mxu0 0.0
        %393 = vmatprep.subr.mxu0 0.0
        %394 = vmatpush1.msra.mxu0 0.0
        %395 = vmatprep.subr.mxu0 0.0
        %396 = vmatpush1.msra.mxu0 0.0
        %397 = vmatprep.subr.mxu0 0.0
        %398 = vmatpush1.msra.mxu0 0.0
        %399 = vmatprep.subr.mxu0 0.0
        %400 = vmatpush1.msra.mxu0 0.0
        %401 = vmatprep.subr.mxu0 0.0
        %402 = vmatpush1.msra.mxu0 0.0
        %403 = vmatprep.subr.mxu0 0.0
        %404 = vmatpush1.msra.mxu0 0.0
        %405 = vmatprep.subr.mxu0 0.0
        %406 = vmatpush1.msra.mxu0 0.0
        %407 = vmatprep.subr.mxu0 0.0
        %408 = vmatpush1.msra.mxu0 0.0
        %409 = vmatprep.subr.mxu0 0.0
        %410 = vmatpush1.msra.mxu0 0.0
        %411 = vmatprep.subr.mxu0 0.0
        %412 = vmatpush1.msra.mxu0 0.0
        %413 = vmatprep.subr.mxu0 0.0
        %414 = vmatpush1.msra.mxu0 0.0
        %415 = vmatprep.subr.mxu0 0.0
        %416 = vmatpush1.msra.mxu0 0.0
        %417 = vmatprep.subr.mxu0 0.0
        %418 = vmatpush1.msra.mxu0 0.0
        %419 = vmatprep.subr.mxu0 0.0
        %420 = vmatpush1.msra.mxu0 0.0
        %421 = vmatprep.subr.mxu0 0.0
        %422 = vmatpush1.msra.mxu0 0.0
        %423 = vmatprep.subr.mxu0 0.0
        %424 = vmatpush1.msra.mxu0 0.0
        %425 = vmatprep.mubr.f32.mxu0 0.0
        %426 = vmatmul.mubr.f32.gmra.mrb[0].mxu0 %v356
        %v427 = vpop.f32.mrb[0].mxu0
        %v428 = vadd.f32 0.0, %v427
        %v429 = vpop.f32.mrb[0].mxu0
        %430 = vmatprep.mubr.f32.mxu0 0.0
        %431 = vmatmul.mubr.f32.gmra.mrb[0].mxu0 %v359
        %v432 = vpop.f32.mrb[0].mxu0
        %v433 = vadd.f32 0.0, %v432
        %v434 = vpop.f32.mrb[0].mxu0
        %435 = vdwg.mxu0
        %v436 = vld [vmem:[%s5] sm:$0xff]
        %v437 = vld [vmem:[%s5 + $0x8] sm:$0xff]
        %v438 = vld [vmem:[%s5 + $0x10] sm:$0xff]
        %v439 = vld [vmem:[%s5 + $0x18] sm:$0xff]
        %v440 = vld [vmem:[%s5 + $0x20] sm:$0xff]
        %v441 = vld [vmem:[%s5 + $0x28] sm:$0xff]
        %v442 = vld [vmem:[%s5 + $0x30] sm:$0xff]
        %v443 = vld [vmem:[%s5 + $0x38] sm:$0xff]
        %v444 = vld [vmem:[%s5 + $0x40] sm:$0xff]
        %v445 = vld [vmem:[%s5 + $0x48] sm:$0xff]
        %v446 = vld [vmem:[%s5 + $0x50] sm:$0xff]
        %v447 = vld [vmem:[%s5 + $0x58] sm:$0xff]
        %v448 = vld [vmem:[%s5 + $0x60] sm:$0xff]
        %v449 = vld [vmem:[%s5 + $0x68] sm:$0xff]
        %v450 = vld [vmem:[%s5 + $0x70] sm:$0xff]
        %v451 = vld [vmem:[%s5 + $0x78] sm:$0xff]
        %v452 = vld [vmem:[%s3] sm:$0xff]
        %v453 = vld [vmem:[%s3 + $0x8] sm:$0xff]
        %v454 = vld [vmem:[%s3 + $0x10] sm:$0xff]
        %v455 = vld [vmem:[%s3 + $0x18] sm:$0xff]
        %v457 = vsel %vm354, %v436, 0
        %v460 = vsel %vm354, %v437, 0
        %v463 = vsel %vm354, %v438, 0
        %v466 = vsel %vm354, %v439, 0
        %v469 = vsel %vm354, %v440, 0
        %v472 = vsel %vm354, %v441, 0
        %v475 = vsel %vm354, %v442, 0
        %v478 = vsel %vm354, %v443, 0
        %v481 = vsel %vm354, %v444, 0
        %v484 = vsel %vm354, %v445, 0
        %v487 = vsel %vm354, %v446, 0
        %v490 = vsel %vm354, %v447, 0
        %v493 = vsel %vm354, %v448, 0
        %v496 = vsel %vm354, %v449, 0
        %v499 = vsel %vm354, %v450, 0
        %v502 = vsel %vm354, %v451, 0
        %504 = vmatprep.subr.mxu0 0.0
        %505 = vmatpush1.msra.mxu0 %v452
        %506 = vmatprep.subr.mxu0 0.0
        %507 = vmatpush1.msra.mxu0 %v453
        %508 = vmatprep.subr.mxu0 0.0
        %509 = vmatpush1.msra.mxu0 %v454
        %510 = vmatprep.subr.mxu0 0.0
        %511 = vmatpush1.msra.mxu0 %v455
        %512 = vmatprep.subr.mxu0 0.0
        %513 = vmatpush1.msra.mxu0 0.0
        %514 = vmatprep.subr.mxu0 0.0
        %515 = vmatpush1.msra.mxu0 0.0
        %516 = vmatprep.subr.mxu0 0.0
        %517 = vmatpush1.msra.mxu0 0.0
        %518 = vmatprep.subr.mxu0 0.0
        %519 = vmatpush1.msra.mxu0 0.0
        %520 = vmatprep.subr.mxu0 0.0
        %521 = vmatpush1.msra.mxu0 0.0
        %522 = vmatprep.subr.mxu0 0.0
        %523 = vmatpush1.msra.mxu0 0.0
        %524 = vmatprep.subr.mxu0 0.0
        %525 = vmatpush1.msra.mxu0 0.0
        %526 = vmatprep.subr.mxu0 0.0
        %527 = vmatpush1.msra.mxu0 0.0
        %528 = vmatprep.subr.mxu0 0.0
        %529 = vmatpush1.msra.mxu0 0.0
        %530 = vmatprep.subr.mxu0 0.0
        %531 = vmatpush1.msra.mxu0 0.0
        %532 = vmatprep.subr.mxu0 0.0
        %533 = vmatpush1.msra.mxu0 0.0
        %534 = vmatprep.subr.mxu0 0.0
        %535 = vmatpush1.msra.mxu0 0.0
        %536 = vmatprep.subr.mxu0 0.0
        %537 = vmatpush1.msra.mxu0 0.0
        %538 = vmatprep.subr.mxu0 0.0
        %539 = vmatpush1.msra.mxu0 0.0
        %540 = vmatprep.subr.mxu0 0.0
        %541 = vmatpush1.msra.mxu0 0.0
        %542 = vmatprep.subr.mxu0 0.0
        %543 = vmatpush1.msra.mxu0 0.0
        %544 = vmatprep.subr.mxu0 0.0
        %545 = vmatpush1.msra.mxu0 0.0
        %546 = vmatprep.subr.mxu0 0.0
        %547 = vmatpush1.msra.mxu0 0.0
        %548 = vmatprep.subr.mxu0 0.0
        %549 = vmatpush1.msra.mxu0 0.0
        %550 = vmatprep.subr.mxu0 0.0
        %551 = vmatpush1.msra.mxu0 0.0
        %552 = vmatprep.subr.mxu0 0.0
        %553 = vmatpush1.msra.mxu0 0.0
        %554 = vmatprep.subr.mxu0 0.0
        %555 = vmatpush1.msra.mxu0 0.0
        %556 = vmatprep.subr.mxu0 0.0
        %557 = vmatpush1.msra.mxu0 0.0
        %558 = vmatprep.subr.mxu0 0.0
        %559 = vmatpush1.msra.mxu0 0.0
        %560 = vmatprep.subr.mxu0 0.0
        %561 = vmatpush1.msra.mxu0 0.0
        %562 = vmatprep.subr.mxu0 0.0
        %563 = vmatpush1.msra.mxu0 0.0
        %564 = vmatprep.subr.mxu0 0.0
        %565 = vmatpush1.msra.mxu0 0.0
        %566 = vmatprep.subr.mxu0 0.0
        %567 = vmatpush1.msra.mxu0 0.0
        %568 = vmatprep.mubr.f32.mxu0 0.0
        %569 = vmatmul.mubr.f32.gmra.mrb[0].mxu0 %v457
        %v570 = vpop.f32.mrb[0].mxu0
        %v571 = vadd.f32 0.0, %v570
        %v572 = vpop.f32.mrb[0].mxu0
        %573 = vmatprep.mubr.f32.mxu0 0.0
        %574 = vmatmul.mubr.f32.gmra.mrb[0].mxu0 %v460
        %v575 = vpop.f32.mrb[0].mxu0
        %v576 = vadd.f32 0.0, %v575
        %v577 = vpop.f32.mrb[0].mxu0
        %578 = vmatprep.mubr.f32.mxu0 0.0
        %579 = vmatmul.mubr.f32.gmra.mrb[0].mxu0 %v463
        %v580 = vpop.f32.mrb[0].mxu0
        %v581 = vadd.f32 0.0, %v580
        %v582 = vpop.f32.mrb[0].mxu0
        %583 = vmatprep.mubr.f32.mxu0 0.0
        %584 = vmatmul.mubr.f32.gmra.mrb[0].mxu0 %v466
        %v585 = vpop.f32.mrb[0].mxu0
        %v586 = vadd.f32 0.0, %v585
        %v587 = vpop.f32.mrb[0].mxu0
        %588 = vmatprep.mubr.f32.mxu0 0.0
        %589 = vmatmul.mubr.f32.gmra.mrb[0].mxu0 %v469
        %v590 = vpop.f32.mrb[0].mxu0
        %v591 = vadd.f32 0.0, %v590
        %v592 = vpop.f32.mrb[0].mxu0
        %593 = vmatprep.mubr.f32.mxu0 0.0
        %594 = vmatmul.mubr.f32.gmra.mrb[0].mxu0 %v472
        %v595 = vpop.f32.mrb[0].mxu0
        %v596 = vadd.f32 0.0, %v595
        %v597 = vpop.f32.mrb[0].mxu0
        %598 = vmatprep.mubr.f32.mxu0 0.0
        %599 = vmatmul.mubr.f32.gmra.mrb[0].mxu0 %v475
        %v600 = vpop.f32.mrb[0].mxu0
        %v601 = vadd.f32 0.0, %v600
        %v602 = vpop.f32.mrb[0].mxu0
        %603 = vmatprep.mubr.f32.mxu0 0.0
        %604 = vmatmul.mubr.f32.gmra.mrb[0].mxu0 %v478
        %v605 = vpop.f32.mrb[0].mxu0
        %v606 = vadd.f32 0.0, %v605
        %v607 = vpop.f32.mrb[0].mxu0
        %608 = vmatprep.mubr.f32.mxu0 0.0
        %609 = vmatmul.mubr.f32.gmra.mrb[0].mxu0 %v481
        %v610 = vpop.f32.mrb[0].mxu0
        %v611 = vadd.f32 0.0, %v610
        %v612 = vpop.f32.mrb[0].mxu0
        %613 = vmatprep.mubr.f32.mxu0 0.0
        %614 = vmatmul.mubr.f32.gmra.mrb[0].mxu0 %v484
        %v615 = vpop.f32.mrb[0].mxu0
        %v616 = vadd.f32 0.0, %v615
        %v617 = vpop.f32.mrb[0].mxu0
        %618 = vmatprep.mubr.f32.mxu0 0.0
        %619 = vmatmul.mubr.f32.gmra.mrb[0].mxu0 %v487
        %v620 = vpop.f32.mrb[0].mxu0
        %v621 = vadd.f32 0.0, %v620
        %v622 = vpop.f32.mrb[0].mxu0
        %623 = vmatprep.mubr.f32.mxu0 0.0
        %624 = vmatmul.mubr.f32.gmra.mrb[0].mxu0 %v490
        %v625 = vpop.f32.mrb[0].mxu0
        %v626 = vadd.f32 0.0, %v625
        %v627 = vpop.f32.mrb[0].mxu0
        %628 = vmatprep.mubr.f32.mxu0 0.0
        %629 = vmatmul.mubr.f32.gmra.mrb[0].mxu0 %v493
        %v630 = vpop.f32.mrb[0].mxu0
        %v631 = vadd.f32 0.0, %v630
        %v632 = vpop.f32.mrb[0].mxu0
        %633 = vmatprep.mubr.f32.mxu0 0.0
        %634 = vmatmul.mubr.f32.gmra.mrb[0].mxu0 %v496
        %v635 = vpop.f32.mrb[0].mxu0
        %v636 = vadd.f32 0.0, %v635
        %v637 = vpop.f32.mrb[0].mxu0
        %638 = vmatprep.mubr.f32.mxu0 0.0
        %639 = vmatmul.mubr.f32.gmra.mrb[0].mxu0 %v499
        %v640 = vpop.f32.mrb[0].mxu0
        %v641 = vadd.f32 0.0, %v640
        %v642 = vpop.f32.mrb[0].mxu0
        %643 = vmatprep.mubr.f32.mxu0 0.0
        %644 = vmatmul.mubr.f32.gmra.mrb[0].mxu0 %v502
        %v645 = vpop.f32.mrb[0].mxu0
        %v646 = vadd.f32 0.0, %v645
        %v647 = vpop.f32.mrb[0].mxu0
        %648 = vdwg.mxu0
        %v649 = vld [vmem:[%s344] sm:$0xff]
        %v651 = vsel %vm354, %v649, 0
        %653 = vmatprep.subr.mxu0 0.0
        %654 = vmatpush1.msra.mxu0 %v350
        %655 = vmatprep.subr.mxu0 0.0
        %656 = vmatpush1.msra.mxu0 %v351
        %657 = vmatprep.subr.mxu0 0.0
        %658 = vmatpush1.msra.mxu0 %v352
        %659 = vmatprep.subr.mxu0 0.0
        %660 = vmatpush1.msra.mxu0 %v353
        %661 = vmatprep.subr.mxu0 0.0
        %662 = vmatpush1.msra.mxu0 0.0
        %663 = vmatprep.subr.mxu0 0.0
        %664 = vmatpush1.msra.mxu0 0.0
        %665 = vmatprep.subr.mxu0 0.0
        %666 = vmatpush1.msra.mxu0 0.0
        %667 = vmatprep.subr.mxu0 0.0
        %668 = vmatpush1.msra.mxu0 0.0
        %669 = vmatprep.subr.mxu0 0.0
        %670 = vmatpush1.msra.mxu0 0.0
        %671 = vmatprep.subr.mxu0 0.0
        %672 = vmatpush1.msra.mxu0 0.0
        %673 = vmatprep.subr.mxu0 0.0
        %674 = vmatpush1.msra.mxu0 0.0
        %675 = vmatprep.subr.mxu0 0.0
        %676 = vmatpush1.msra.mxu0 0.0
        %677 = vmatprep.subr.mxu0 0.0
        %678 = vmatpush1.msra.mxu0 0.0
        %679 = vmatprep.subr.mxu0 0.0
        %680 = vmatpush1.msra.mxu0 0.0
        %681 = vmatprep.subr.mxu0 0.0
        %682 = vmatpush1.msra.mxu0 0.0
        %683 = vmatprep.subr.mxu0 0.0
        %684 = vmatpush1.msra.mxu0 0.0
        %685 = vmatprep.subr.mxu0 0.0
        %686 = vmatpush1.msra.mxu0 0.0
        %687 = vmatprep.subr.mxu0 0.0
        %688 = vmatpush1.msra.mxu0 0.0
        %689 = vmatprep.subr.mxu0 0.0
        %690 = vmatpush1.msra.mxu0 0.0
        %691 = vmatprep.subr.mxu0 0.0
        %692 = vmatpush1.msra.mxu0 0.0
        %693 = vmatprep.subr.mxu0 0.0
        %694 = vmatpush1.msra.mxu0 0.0
        %695 = vmatprep.subr.mxu0 0.0
        %696 = vmatpush1.msra.mxu0 0.0
        %697 = vmatprep.subr.mxu0 0.0
        %698 = vmatpush1.msra.mxu0 0.0
        %699 = vmatprep.subr.mxu0 0.0
        %700 = vmatpush1.msra.mxu0 0.0
        %701 = vmatprep.subr.mxu0 0.0
        %702 = vmatpush1.msra.mxu0 0.0
        %703 = vmatprep.subr.mxu0 0.0
        %704 = vmatpush1.msra.mxu0 0.0
        %705 = vmatprep.subr.mxu0 0.0
        %706 = vmatpush1.msra.mxu0 0.0
        %707 = vmatprep.subr.mxu0 0.0
        %708 = vmatpush1.msra.mxu0 0.0
        %709 = vmatprep.subr.mxu0 0.0
        %710 = vmatpush1.msra.mxu0 0.0
        %711 = vmatprep.subr.mxu0 0.0
        %712 = vmatpush1.msra.mxu0 0.0
        %713 = vmatprep.subr.mxu0 0.0
        %714 = vmatpush1.msra.mxu0 0.0
        %715 = vmatprep.subr.mxu0 0.0
        %716 = vmatpush1.msra.mxu0 0.0
        %717 = vmatprep.mubr.f32.mxu0 0.0
        %718 = vmatmul.mubr.f32.gmra.mrb[0].mxu0 %v651
        %v719 = vpop.f32.mrb[0].mxu0
        %v720 = vadd.f32 0.0, %v719
        %v721 = vpop.f32.mrb[0].mxu0
        %722 = vdwg.mxu0
        %v723 = vld [vmem:[%s6] sm:$0xf]
        %724 = vmatprep.subr.mxu0 0.0
        %725 = vmatpush1.msra.mxu0 %v571
        %726 = vmatprep.subr.mxu0 0.0
        %727 = vmatpush1.msra.mxu0 %v576
        %728 = vmatprep.subr.mxu0 0.0
        %729 = vmatpush1.msra.mxu0 %v581
        %730 = vmatprep.subr.mxu0 0.0
        %731 = vmatpush1.msra.mxu0 %v586
        %732 = vmatprep.subr.mxu0 0.0
        %733 = vmatpush1.msra.mxu0 %v591
        %734 = vmatprep.subr.mxu0 0.0
        %735 = vmatpush1.msra.mxu0 %v596
        %736 = vmatprep.subr.mxu0 0.0
        %737 = vmatpush1.msra.mxu0 %v601
        %738 = vmatprep.subr.mxu0 0.0
        %739 = vmatpush1.msra.mxu0 %v606
        %740 = vmatprep.subr.mxu0 0.0
        %741 = vmatpush1.msra.mxu0 %v611
        %742 = vmatprep.subr.mxu0 0.0
        %743 = vmatpush1.msra.mxu0 %v616
        %744 = vmatprep.subr.mxu0 0.0
        %745 = vmatpush1.msra.mxu0 %v621
        %746 = vmatprep.subr.mxu0 0.0
        %747 = vmatpush1.msra.mxu0 %v626
        %748 = vmatprep.subr.mxu0 0.0
        %749 = vmatpush1.msra.mxu0 %v631
        %750 = vmatprep.subr.mxu0 0.0
        %751 = vmatpush1.msra.mxu0 %v636
        %752 = vmatprep.subr.mxu0 0.0
        %753 = vmatpush1.msra.mxu0 %v641
        %754 = vmatprep.subr.mxu0 0.0
        %755 = vmatpush1.msra.mxu0 %v646
        %756 = vmatprep.subr.mxu0 0.0
        %757 = vmatpush1.msra.mxu0 0.0
        %758 = vmatprep.subr.mxu0 0.0
        %759 = vmatpush1.msra.mxu0 0.0
        %760 = vmatprep.subr.mxu0 0.0
        %761 = vmatpush1.msra.mxu0 0.0
        %762 = vmatprep.subr.mxu0 0.0
        %763 = vmatpush1.msra.mxu0 0.0
        %764 = vmatprep.subr.mxu0 0.0
        %765 = vmatpush1.msra.mxu0 0.0
        %766 = vmatprep.subr.mxu0 0.0
        %767 = vmatpush1.msra.mxu0 0.0
        %768 = vmatprep.subr.mxu0 0.0
        %769 = vmatpush1.msra.mxu0 0.0
        %770 = vmatprep.subr.mxu0 0.0
        %771 = vmatpush1.msra.mxu0 0.0
        %772 = vmatprep.subr.mxu0 0.0
        %773 = vmatpush1.msra.mxu0 0.0
        %774 = vmatprep.subr.mxu0 0.0
        %775 = vmatpush1.msra.mxu0 0.0
        %776 = vmatprep.subr.mxu0 0.0
        %777 = vmatpush1.msra.mxu0 0.0
        %778 = vmatprep.subr.mxu0 0.0
        %779 = vmatpush1.msra.mxu0 0.0
        %780 = vmatprep.subr.mxu0 0.0
        %781 = vmatpush1.msra.mxu0 0.0
        %782 = vmatprep.subr.mxu0 0.0
        %783 = vmatpush1.msra.mxu0 0.0
        %784 = vmatprep.subr.mxu0 0.0
        %785 = vmatpush1.msra.mxu0 0.0
        %786 = vmatprep.subr.mxu0 0.0
        %787 = vmatpush1.msra.mxu0 0.0
        %788 = vmatprep.mubr.f32.mxu0 0.0
        %789 = vmatmul.mubr.f32.gmra.mrb[0].mxu0 %v723
        %v790 = vpop.f32.mrb[0].mxu0
        %v791 = vadd.f32 0.0, %v790
        %v792 = vpop.f32.mrb[0].mxu0
        %793 = vdwg.mxu0
        %v794 = vld [vmem:[%s7] sm:$0xff]
        %v795 = vld [vmem:[%s7 + $0x8] sm:$0xff]
        %v796 = vld [vmem:[%s7 + $0x10] sm:$0xff]
        %v797 = vld [vmem:[%s7 + $0x18] sm:$0xff]
        %v798 = vld [vmem:[%s7 + $0x20] sm:$0xff]
        %v799 = vld [vmem:[%s7 + $0x28] sm:$0xff]
        %v800 = vld [vmem:[%s7 + $0x30] sm:$0xff]
        %v801 = vld [vmem:[%s7 + $0x38] sm:$0xff]
        %v802 = vld [vmem:[%s7 + $0x40] sm:$0xff]
        %v803 = vld [vmem:[%s7 + $0x48] sm:$0xff]
        %v804 = vld [vmem:[%s7 + $0x50] sm:$0xff]
        %v805 = vld [vmem:[%s7 + $0x58] sm:$0xff]
        %v806 = vld [vmem:[%s7 + $0x60] sm:$0xff]
        %v807 = vld [vmem:[%s7 + $0x68] sm:$0xff]
        %v808 = vld [vmem:[%s7 + $0x70] sm:$0xff]
        %v809 = vld [vmem:[%s7 + $0x78] sm:$0xff]
        %810 = vmatprep.subr.mxu0 0.0
        %811 = vmatpush1.msra.mxu0 %v794
        %812 = vmatprep.subr.mxu0 0.0
        %813 = vmatpush1.msra.mxu0 %v795
        %814 = vmatprep.subr.mxu0 0.0
        %815 = vmatpush1.msra.mxu0 %v796
        %816 = vmatprep.subr.mxu0 0.0
        %817 = vmatpush1.msra.mxu0 %v797
        %818 = vmatprep.subr.mxu0 0.0
        %819 = vmatpush1.msra.mxu0 %v798
        %820 = vmatprep.subr.mxu0 0.0
        %821 = vmatpush1.msra.mxu0 %v799
        %822 = vmatprep.subr.mxu0 0.0
        %823 = vmatpush1.msra.mxu0 %v800
        %824 = vmatprep.subr.mxu0 0.0
        %825 = vmatpush1.msra.mxu0 %v801
        %826 = vmatprep.subr.mxu0 0.0
        %827 = vmatpush1.msra.mxu0 %v802
        %828 = vmatprep.subr.mxu0 0.0
        %829 = vmatpush1.msra.mxu0 %v803
        %830 = vmatprep.subr.mxu0 0.0
        %831 = vmatpush1.msra.mxu0 %v804
        %832 = vmatprep.subr.mxu0 0.0
        %833 = vmatpush1.msra.mxu0 %v805
        %834 = vmatprep.subr.mxu0 0.0
        %835 = vmatpush1.msra.mxu0 %v806
        %836 = vmatprep.subr.mxu0 0.0
        %837 = vmatpush1.msra.mxu0 %v807
        %838 = vmatprep.subr.mxu0 0.0
        %839 = vmatpush1.msra.mxu0 %v808
        %840 = vmatprep.subr.mxu0 0.0
        %841 = vmatpush1.msra.mxu0 %v809
        %842 = vmatprep.subr.mxu0 0.0
        %843 = vmatpush1.msra.mxu0 0.0
        %844 = vmatprep.subr.mxu0 0.0
        %845 = vmatpush1.msra.mxu0 0.0
        %846 = vmatprep.subr.mxu0 0.0
        %847 = vmatpush1.msra.mxu0 0.0
        %848 = vmatprep.subr.mxu0 0.0
        %849 = vmatpush1.msra.mxu0 0.0
        %850 = vmatprep.subr.mxu0 0.0
        %851 = vmatpush1.msra.mxu0 0.0
        %852 = vmatprep.subr.mxu0 0.0
        %853 = vmatpush1.msra.mxu0 0.0
        %854 = vmatprep.subr.mxu0 0.0
        %855 = vmatpush1.msra.mxu0 0.0
        %856 = vmatprep.subr.mxu0 0.0
        %857 = vmatpush1.msra.mxu0 0.0
        %858 = vmatprep.subr.mxu0 0.0
        %859 = vmatpush1.msra.mxu0 0.0
        %860 = vmatprep.subr.mxu0 0.0
        %861 = vmatpush1.msra.mxu0 0.0
        %862 = vmatprep.subr.mxu0 0.0
        %863 = vmatpush1.msra.mxu0 0.0
        %864 = vmatprep.subr.mxu0 0.0
        %865 = vmatpush1.msra.mxu0 0.0
        %866 = vmatprep.subr.mxu0 0.0
        %867 = vmatpush1.msra.mxu0 0.0
        %868 = vmatprep.subr.mxu0 0.0
        %869 = vmatpush1.msra.mxu0 0.0
        %870 = vmatprep.subr.mxu0 0.0
        %871 = vmatpush1.msra.mxu0 0.0
        %872 = vmatprep.subr.mxu0 0.0
        %873 = vmatpush1.msra.mxu0 0.0
        %874 = vmatprep.mubr.f32.mxu0 0.0
        %875 = vmatmul.mubr.f32.gmra.mrb[0].mxu0 %v720
        %v876 = vpop.f32.mrb[0].mxu0
        %v877 = vadd.f32 0.0, %v876
        %v878 = vpop.f32.mrb[0].mxu0
        %879 = vdwg.mxu0
        %s880 = smul.u32 %s23, 8
        %v881 = vlaneseq
        %v882 = vshrl.u32 %v881, 7
        %v883 = vstv %s880
        %v884 = vadd.s32 %v883, %v882
        %v885 = vlaneseq
        %v886 = vand.u32 %v885, 127
        %v887 = vld [vmem:[%s340] sm:$0xf]
        %vm888 = vcmp.gt.bf16.partialorder %v887, 0
        %vm889 = vcmp.eq.s32.totalorder %v884, %v886
        %vm890 = vmpackc.low %vm889, %vm889
        %vm891 = vmor %vm888, %vm890
        %893 = vset.pattern.permute.xlu0 0
        %894 = vperm.xlu0 %893, %v877
        %v895 = vpop.permute.xlu0 %894
        %v897 = vlaneseq
        %v898 = vshrl.u32 %v897, 7
        %v899 = vsub.s32 0, %v898
        %v900 = vrot.slane %v791, %v899
        %v901 = vadd.f32 %v895, %v900
        %v902 = vmul.f32 %v901, 0.2
        %v903 = vmax.f32 %v901, %v902
        %v904 = vsel %vm891, 65537, 0
        %v905 = vunpack.c.l.b16 %v904
        %vm906 = vcmp.ne.s32.totalorder %v905, 0
        %v907 = vsel %vm906, %v903, -1e+30
        %vm908 = vcmask 130048
        %v909 = vsel %vm908, %v907, -inf
        %910 = vmax.xlane.f32.xlu0 %v909
        %v911 = vpop.xlane.xlu0 %910
        %v912 = vsub.f32 %v907, %v911
        %v913 = vmul.f32 %v912, 1.442695
        %v914 = vpow.pop %v913
        %v915 = vsel %vm908, %v914, 0.0
        %916 = vadd.xlane.f32.xlu0 %v915
        %v917 = vpop.xlane.xlu0 %916
        %v918 = vrcp.pop %v917
        %v919 = vmul.f32 %v914, %v918
        %v920 = vld [vmem:[%s8] sm:$0x1]
        %v922 = vlaneseq
        %v923 = vshrl.u32 %v922, 7
        %v924 = vsub.s32 0, %v923
        %v925 = vrot.slane %v920, %v924
        %v928 = vsel %vm908, %v919, 0
        %930 = vmatprep.subr.mxu0 0.0
        %931 = vmatpush1.msra.mxu0 %v428
        %932 = vmatprep.subr.mxu0 0.0
        %933 = vmatpush1.msra.mxu0 %v433
        %934 = vmatprep.subr.mxu0 0.0
        %935 = vmatpush1.msra.mxu0 0.0
        %936 = vmatprep.subr.mxu0 0.0
        %937 = vmatpush1.msra.mxu0 0.0
        %938 = vmatprep.subr.mxu0 0.0
        %939 = vmatpush1.msra.mxu0 0.0
        %940 = vmatprep.subr.mxu0 0.0
        %941 = vmatpush1.msra.mxu0 0.0
        %942 = vmatprep.subr.mxu0 0.0
        %943 = vmatpush1.msra.mxu0 0.0
        %944 = vmatprep.subr.mxu0 0.0
        %945 = vmatpush1.msra.mxu0 0.0
        %946 = vmatprep.subr.mxu0 0.0
        %947 = vmatpush1.msra.mxu0 0.0
        %948 = vmatprep.subr.mxu0 0.0
        %949 = vmatpush1.msra.mxu0 0.0
        %950 = vmatprep.subr.mxu0 0.0
        %951 = vmatpush1.msra.mxu0 0.0
        %952 = vmatprep.subr.mxu0 0.0
        %953 = vmatpush1.msra.mxu0 0.0
        %954 = vmatprep.subr.mxu0 0.0
        %955 = vmatpush1.msra.mxu0 0.0
        %956 = vmatprep.subr.mxu0 0.0
        %957 = vmatpush1.msra.mxu0 0.0
        %958 = vmatprep.subr.mxu0 0.0
        %959 = vmatpush1.msra.mxu0 0.0
        %960 = vmatprep.subr.mxu0 0.0
        %961 = vmatpush1.msra.mxu0 0.0
        %962 = vmatprep.subr.mxu0 0.0
        %963 = vmatpush1.msra.mxu0 0.0
        %964 = vmatprep.subr.mxu0 0.0
        %965 = vmatpush1.msra.mxu0 0.0
        %966 = vmatprep.subr.mxu0 0.0
        %967 = vmatpush1.msra.mxu0 0.0
        %968 = vmatprep.subr.mxu0 0.0
        %969 = vmatpush1.msra.mxu0 0.0
        %970 = vmatprep.subr.mxu0 0.0
        %971 = vmatpush1.msra.mxu0 0.0
        %972 = vmatprep.subr.mxu0 0.0
        %973 = vmatpush1.msra.mxu0 0.0
        %974 = vmatprep.subr.mxu0 0.0
        %975 = vmatpush1.msra.mxu0 0.0
        %976 = vmatprep.subr.mxu0 0.0
        %977 = vmatpush1.msra.mxu0 0.0
        %978 = vmatprep.subr.mxu0 0.0
        %979 = vmatpush1.msra.mxu0 0.0
        %980 = vmatprep.subr.mxu0 0.0
        %981 = vmatpush1.msra.mxu0 0.0
        %982 = vmatprep.subr.mxu0 0.0
        %983 = vmatpush1.msra.mxu0 0.0
        %984 = vmatprep.subr.mxu0 0.0
        %985 = vmatpush1.msra.mxu0 0.0
        %986 = vmatprep.subr.mxu0 0.0
        %987 = vmatpush1.msra.mxu0 0.0
        %988 = vmatprep.subr.mxu0 0.0
        %989 = vmatpush1.msra.mxu0 0.0
        %990 = vmatprep.subr.mxu0 0.0
        %991 = vmatpush1.msra.mxu0 0.0
        %992 = vmatprep.subr.mxu0 0.0
        %993 = vmatpush1.msra.mxu0 0.0
        %994 = vmatprep.mubr.f32.mxu0 0.0
        %995 = vmatmul.mubr.f32.gmra.mrb[0].mxu0 %v928
        %v996 = vpop.f32.mrb[0].mxu0
        %v997 = vadd.f32 %v925, %v996
        %v998 = vpop.f32.mrb[0].mxu0
        %999 = vdwg.mxu0
        %1000 = vst.msk [vmem:[%s336] sm:$0xff] %vm354, %v997
        %1001 = vset.pattern.permute.xlu0 1
        %1002 = vperm.xlu0 %1001, %v877
        %v1003 = vpop.permute.xlu0 %1002
        %v1005 = vlaneseq
        %v1006 = vshrl.u32 %v1005, 7
        %v1007 = vsub.s32 1, %v1006
        %v1008 = vrot.slane %v791, %v1007
        %v1009 = vadd.f32 %v1003, %v1008
        %v1010 = vmul.f32 %v1009, 0.2
        %v1011 = vmax.f32 %v1009, %v1010
        %v1012 = vsel %vm906, %v1011, -1e+30
        %v1013 = vsel %vm908, %v1012, -inf
        %1014 = vmax.xlane.f32.xlu0 %v1013
        %v1015 = vpop.xlane.xlu0 %1014
        %v1016 = vsub.f32 %v1012, %v1015
        %v1017 = vmul.f32 %v1016, 1.442695
        %v1018 = vpow.pop %v1017
        %v1019 = vsel %vm908, %v1018, 0.0
        %1020 = vadd.xlane.f32.xlu0 %v1019
        %v1021 = vpop.xlane.xlu0 %1020
        %v1022 = vrcp.pop %v1021
        %v1023 = vmul.f32 %v1018, %v1022
        %v1024 = vld [vmem:[%s8] sm:$0x1]
        %v1026 = vlaneseq
        %v1027 = vshrl.u32 %v1026, 7
        %v1028 = vsub.s32 0, %v1027
        %v1029 = vrot.slane %v1024, %v1028
        %1032 = vrot.lane.b32.xlu0 %v428, 96
        %v1033 = vpop.permute.xlu0 %1032
        %1034 = vrot.lane.b32.xlu0 %v433, 96
        %v1035 = vpop.permute.xlu0 %1034
        %1038 = vrot.lane.b32.xlu0 %v1029, 96
        %v1039 = vpop.permute.xlu0 %1038
        %v1042 = vsel %vm908, %v1023, 0
        %1044 = vmatprep.subr.mxu0 0.0
        %1045 = vmatpush1.msra.mxu0 %v1033
        %1046 = vmatprep.subr.mxu0 0.0
        %1047 = vmatpush1.msra.mxu0 %v1035
        %1048 = vmatprep.subr.mxu0 0.0
        %1049 = vmatpush1.msra.mxu0 0.0
        %1050 = vmatprep.subr.mxu0 0.0
        %1051 = vmatpush1.msra.mxu0 0.0
        %1052 = vmatprep.subr.mxu0 0.0
        %1053 = vmatpush1.msra.mxu0 0.0
        %1054 = vmatprep.subr.mxu0 0.0
        %1055 = vmatpush1.msra.mxu0 0.0
        %1056 = vmatprep.subr.mxu0 0.0
        %1057 = vmatpush1.msra.mxu0 0.0
        %1058 = vmatprep.subr.mxu0 0.0
        %1059 = vmatpush1.msra.mxu0 0.0
        %1060 = vmatprep.subr.mxu0 0.0
        %1061 = vmatpush1.msra.mxu0 0.0
        %1062 = vmatprep.subr.mxu0 0.0
        %1063 = vmatpush1.msra.mxu0 0.0
        %1064 = vmatprep.subr.mxu0 0.0
        %1065 = vmatpush1.msra.mxu0 0.0
        %1066 = vmatprep.subr.mxu0 0.0
        %1067 = vmatpush1.msra.mxu0 0.0
        %1068 = vmatprep.subr.mxu0 0.0
        %1069 = vmatpush1.msra.mxu0 0.0
        %1070 = vmatprep.subr.mxu0 0.0
        %1071 = vmatpush1.msra.mxu0 0.0
        %1072 = vmatprep.subr.mxu0 0.0
        %1073 = vmatpush1.msra.mxu0 0.0
        %1074 = vmatprep.subr.mxu0 0.0
        %1075 = vmatpush1.msra.mxu0 0.0
        %1076 = vmatprep.subr.mxu0 0.0
        %1077 = vmatpush1.msra.mxu0 0.0
        %1078 = vmatprep.subr.mxu0 0.0
        %1079 = vmatpush1.msra.mxu0 0.0
        %1080 = vmatprep.subr.mxu0 0.0
        %1081 = vmatpush1.msra.mxu0 0.0
        %1082 = vmatprep.subr.mxu0 0.0
        %1083 = vmatpush1.msra.mxu0 0.0
        %1084 = vmatprep.subr.mxu0 0.0
        %1085 = vmatpush1.msra.mxu0 0.0
        %1086 = vmatprep.subr.mxu0 0.0
        %1087 = vmatpush1.msra.mxu0 0.0
        %1088 = vmatprep.subr.mxu0 0.0
        %1089 = vmatpush1.msra.mxu0 0.0
        %1090 = vmatprep.subr.mxu0 0.0
        %1091 = vmatpush1.msra.mxu0 0.0
        %1092 = vmatprep.subr.mxu0 0.0
        %1093 = vmatpush1.msra.mxu0 0.0
        %1094 = vmatprep.subr.mxu0 0.0
        %1095 = vmatpush1.msra.mxu0 0.0
        %1096 = vmatprep.subr.mxu0 0.0
        %1097 = vmatpush1.msra.mxu0 0.0
        %1098 = vmatprep.subr.mxu0 0.0
        %1099 = vmatpush1.msra.mxu0 0.0
        %1100 = vmatprep.subr.mxu0 0.0
        %1101 = vmatpush1.msra.mxu0 0.0
        %1102 = vmatprep.subr.mxu0 0.0
        %1103 = vmatpush1.msra.mxu0 0.0
        %1104 = vmatprep.subr.mxu0 0.0
        %1105 = vmatpush1.msra.mxu0 0.0
        %1106 = vmatprep.subr.mxu0 0.0
        %1107 = vmatpush1.msra.mxu0 0.0
        %1108 = vmatprep.mubr.f32.mxu0 0.0
        %1109 = vmatmul.mubr.f32.gmra.mrb[0].mxu0 %v1042
        %v1110 = vpop.f32.mrb[0].mxu0
        %v1111 = vadd.f32 %v1039, %v1110
        %v1112 = vpop.f32.mrb[0].mxu0
        %1113 = vdwg.mxu0
        %1115 = vrot.lane.b32.xlu0 %v1111, 32
        %v1116 = vpop.permute.xlu0 %1115
        %vm1118 = vcmask 523520
        %1119 = vst.msk [vmem:[%s336] sm:$0xff] %vm1118, %v1116
        %1120 = vset.pattern.permute.xlu0 2
        %1121 = vperm.xlu0 %1120, %v877
        %v1122 = vpop.permute.xlu0 %1121
        %v1124 = vlaneseq
        %v1125 = vshrl.u32 %v1124, 7
        %v1126 = vsub.s32 2, %v1125
        %v1127 = vrot.slane %v791, %v1126
        %v1128 = vadd.f32 %v1122, %v1127
        %v1129 = vmul.f32 %v1128, 0.2
        %v1130 = vmax.f32 %v1128, %v1129
        %v1131 = vsel %vm906, %v1130, -1e+30
        %v1132 = vsel %vm908, %v1131, -inf
        %1133 = vmax.xlane.f32.xlu0 %v1132
        %v1134 = vpop.xlane.xlu0 %1133
        %v1135 = vsub.f32 %v1131, %v1134
        %v1136 = vmul.f32 %v1135, 1.442695
        %v1137 = vpow.pop %v1136
        %v1138 = vsel %vm908, %v1137, 0.0
        %1139 = vadd.xlane.f32.xlu0 %v1138
        %v1140 = vpop.xlane.xlu0 %1139
        %v1141 = vrcp.pop %v1140
        %v1142 = vmul.f32 %v1137, %v1141
        %v1143 = vld [vmem:[%s8] sm:$0x1]
        %v1145 = vlaneseq
        %v1146 = vshrl.u32 %v1145, 7
        %v1147 = vsub.s32 0, %v1146
        %v1148 = vrot.slane %v1143, %v1147
        %1149 = vrot.lane.b32.xlu0 %v428, 64
        %v1150 = vpop.permute.xlu0 %1149
        %1151 = vrot.lane.b32.xlu0 %v433, 64
        %v1152 = vpop.permute.xlu0 %1151
        %1155 = vrot.lane.b32.xlu0 %v1148, 64
        %v1156 = vpop.permute.xlu0 %1155
        %v1159 = vsel %vm908, %v1142, 0
        %1161 = vmatprep.subr.mxu0 0.0
        %1162 = vmatpush1.msra.mxu0 %v1150
        %1163 = vmatprep.subr.mxu0 0.0
        %1164 = vmatpush1.msra.mxu0 %v1152
        %1165 = vmatprep.subr.mxu0 0.0
        %1166 = vmatpush1.msra.mxu0 0.0
        %1167 = vmatprep.subr.mxu0 0.0
        %1168 = vmatpush1.msra.mxu0 0.0
        %1169 = vmatprep.subr.mxu0 0.0
        %1170 = vmatpush1.msra.mxu0 0.0
        %1171 = vmatprep.subr.mxu0 0.0
        %1172 = vmatpush1.msra.mxu0 0.0
        %1173 = vmatprep.subr.mxu0 0.0
        %1174 = vmatpush1.msra.mxu0 0.0
        %1175 = vmatprep.subr.mxu0 0.0
        %1176 = vmatpush1.msra.mxu0 0.0
        %1177 = vmatprep.subr.mxu0 0.0
        %1178 = vmatpush1.msra.mxu0 0.0
        %1179 = vmatprep.subr.mxu0 0.0
        %1180 = vmatpush1.msra.mxu0 0.0
        %1181 = vmatprep.subr.mxu0 0.0
        %1182 = vmatpush1.msra.mxu0 0.0
        %1183 = vmatprep.subr.mxu0 0.0
        %1184 = vmatpush1.msra.mxu0 0.0
        %1185 = vmatprep.subr.mxu0 0.0
        %1186 = vmatpush1.msra.mxu0 0.0
        %1187 = vmatprep.subr.mxu0 0.0
        %1188 = vmatpush1.msra.mxu0 0.0
        %1189 = vmatprep.subr.mxu0 0.0
        %1190 = vmatpush1.msra.mxu0 0.0
        %1191 = vmatprep.subr.mxu0 0.0
        %1192 = vmatpush1.msra.mxu0 0.0
        %1193 = vmatprep.subr.mxu0 0.0
        %1194 = vmatpush1.msra.mxu0 0.0
        %1195 = vmatprep.subr.mxu0 0.0
        %1196 = vmatpush1.msra.mxu0 0.0
        %1197 = vmatprep.subr.mxu0 0.0
        %1198 = vmatpush1.msra.mxu0 0.0
        %1199 = vmatprep.subr.mxu0 0.0
        %1200 = vmatpush1.msra.mxu0 0.0
        %1201 = vmatprep.subr.mxu0 0.0
        %1202 = vmatpush1.msra.mxu0 0.0
        %1203 = vmatprep.subr.mxu0 0.0
        %1204 = vmatpush1.msra.mxu0 0.0
        %1205 = vmatprep.subr.mxu0 0.0
        %1206 = vmatpush1.msra.mxu0 0.0
        %1207 = vmatprep.subr.mxu0 0.0
        %1208 = vmatpush1.msra.mxu0 0.0
        %1209 = vmatprep.subr.mxu0 0.0
        %1210 = vmatpush1.msra.mxu0 0.0
        %1211 = vmatprep.subr.mxu0 0.0
        %1212 = vmatpush1.msra.mxu0 0.0
        %1213 = vmatprep.subr.mxu0 0.0
        %1214 = vmatpush1.msra.mxu0 0.0
        %1215 = vmatprep.subr.mxu0 0.0
        %1216 = vmatpush1.msra.mxu0 0.0
        %1217 = vmatprep.subr.mxu0 0.0
        %1218 = vmatpush1.msra.mxu0 0.0
        %1219 = vmatprep.subr.mxu0 0.0
        %1220 = vmatpush1.msra.mxu0 0.0
        %1221 = vmatprep.subr.mxu0 0.0
        %1222 = vmatpush1.msra.mxu0 0.0
        %1223 = vmatprep.subr.mxu0 0.0
        %1224 = vmatpush1.msra.mxu0 0.0
        %1225 = vmatprep.mubr.f32.mxu0 0.0
        %1226 = vmatmul.mubr.f32.gmra.mrb[0].mxu0 %v1159
        %v1227 = vpop.f32.mrb[0].mxu0
        %v1228 = vadd.f32 %v1156, %v1227
        %v1229 = vpop.f32.mrb[0].mxu0
        %1230 = vdwg.mxu0
        %1232 = vrot.lane.b32.xlu0 %v1228, 64
        %v1233 = vpop.permute.xlu0 %1232
        %vm1235 = vcmask 785920
        %1236 = vst.msk [vmem:[%s336] sm:$0xff] %vm1235, %v1233
        %1237 = vset.pattern.permute.xlu0 3
        %1238 = vperm.xlu0 %1237, %v877
        %v1239 = vpop.permute.xlu0 %1238
        %v1241 = vlaneseq
        %v1242 = vshrl.u32 %v1241, 7
        %v1243 = vsub.s32 3, %v1242
        %v1244 = vrot.slane %v791, %v1243
        %v1245 = vadd.f32 %v1239, %v1244
        %v1246 = vmul.f32 %v1245, 0.2
        %v1247 = vmax.f32 %v1245, %v1246
        %v1248 = vsel %vm906, %v1247, -1e+30
        %v1249 = vsel %vm908, %v1248, -inf
        %1250 = vmax.xlane.f32.xlu0 %v1249
        %v1251 = vpop.xlane.xlu0 %1250
        %v1252 = vsub.f32 %v1248, %v1251
        %v1253 = vmul.f32 %v1252, 1.442695
        %v1254 = vpow.pop %v1253
        %v1255 = vsel %vm908, %v1254, 0.0
        %1256 = vadd.xlane.f32.xlu0 %v1255
        %v1257 = vpop.xlane.xlu0 %1256
        %v1258 = vrcp.pop %v1257
        %v1259 = vmul.f32 %v1254, %v1258
        %v1260 = vld [vmem:[%s8] sm:$0x1]
        %v1262 = vlaneseq
        %v1263 = vshrl.u32 %v1262, 7
        %v1264 = vsub.s32 0, %v1263
        %v1265 = vrot.slane %v1260, %v1264
        %1266 = vrot.lane.b32.xlu0 %v428, 32
        %v1267 = vpop.permute.xlu0 %1266
        %1268 = vrot.lane.b32.xlu0 %v433, 32
        %v1269 = vpop.permute.xlu0 %1268
        %1272 = vrot.lane.b32.xlu0 %v1265, 32
        %v1273 = vpop.permute.xlu0 %1272
        %v1276 = vsel %vm908, %v1259, 0
        %1278 = vmatprep.subr.mxu0 0.0
        %1279 = vmatpush1.msra.mxu0 %v1267
        %1280 = vmatprep.subr.mxu0 0.0
        %1281 = vmatpush1.msra.mxu0 %v1269
        %1282 = vmatprep.subr.mxu0 0.0
        %1283 = vmatpush1.msra.mxu0 0.0
        %1284 = vmatprep.subr.mxu0 0.0
        %1285 = vmatpush1.msra.mxu0 0.0
        %1286 = vmatprep.subr.mxu0 0.0
        %1287 = vmatpush1.msra.mxu0 0.0
        %1288 = vmatprep.subr.mxu0 0.0
        %1289 = vmatpush1.msra.mxu0 0.0
        %1290 = vmatprep.subr.mxu0 0.0
        %1291 = vmatpush1.msra.mxu0 0.0
        %1292 = vmatprep.subr.mxu0 0.0
        %1293 = vmatpush1.msra.mxu0 0.0
        %1294 = vmatprep.subr.mxu0 0.0
        %1295 = vmatpush1.msra.mxu0 0.0
        %1296 = vmatprep.subr.mxu0 0.0
        %1297 = vmatpush1.msra.mxu0 0.0
        %1298 = vmatprep.subr.mxu0 0.0
        %1299 = vmatpush1.msra.mxu0 0.0
        %1300 = vmatprep.subr.mxu0 0.0
        %1301 = vmatpush1.msra.mxu0 0.0
        %1302 = vmatprep.subr.mxu0 0.0
        %1303 = vmatpush1.msra.mxu0 0.0
        %1304 = vmatprep.subr.mxu0 0.0
        %1305 = vmatpush1.msra.mxu0 0.0
        %1306 = vmatprep.subr.mxu0 0.0
        %1307 = vmatpush1.msra.mxu0 0.0
        %1308 = vmatprep.subr.mxu0 0.0
        %1309 = vmatpush1.msra.mxu0 0.0
        %1310 = vmatprep.subr.mxu0 0.0
        %1311 = vmatpush1.msra.mxu0 0.0
        %1312 = vmatprep.subr.mxu0 0.0
        %1313 = vmatpush1.msra.mxu0 0.0
        %1314 = vmatprep.subr.mxu0 0.0
        %1315 = vmatpush1.msra.mxu0 0.0
        %1316 = vmatprep.subr.mxu0 0.0
        %1317 = vmatpush1.msra.mxu0 0.0
        %1318 = vmatprep.subr.mxu0 0.0
        %1319 = vmatpush1.msra.mxu0 0.0
        %1320 = vmatprep.subr.mxu0 0.0
        %1321 = vmatpush1.msra.mxu0 0.0
        %1322 = vmatprep.subr.mxu0 0.0
        %1323 = vmatpush1.msra.mxu0 0.0
        %1324 = vmatprep.subr.mxu0 0.0
        %1325 = vmatpush1.msra.mxu0 0.0
        %1326 = vmatprep.subr.mxu0 0.0
        %1327 = vmatpush1.msra.mxu0 0.0
        %1328 = vmatprep.subr.mxu0 0.0
        %1329 = vmatpush1.msra.mxu0 0.0
        %1330 = vmatprep.subr.mxu0 0.0
        %1331 = vmatpush1.msra.mxu0 0.0
        %1332 = vmatprep.subr.mxu0 0.0
        %1333 = vmatpush1.msra.mxu0 0.0
        %1334 = vmatprep.subr.mxu0 0.0
        %1335 = vmatpush1.msra.mxu0 0.0
        %1336 = vmatprep.subr.mxu0 0.0
        %1337 = vmatpush1.msra.mxu0 0.0
        %1338 = vmatprep.subr.mxu0 0.0
        %1339 = vmatpush1.msra.mxu0 0.0
        %1340 = vmatprep.subr.mxu0 0.0
        %1341 = vmatpush1.msra.mxu0 0.0
        %1342 = vmatprep.mubr.f32.mxu0 0.0
        %1343 = vmatmul.mubr.f32.gmra.mrb[0].mxu0 %v1276
        %v1344 = vpop.f32.mrb[0].mxu0
        %v1345 = vadd.f32 %v1273, %v1344
        %v1346 = vpop.f32.mrb[0].mxu0
        %1347 = vdwg.mxu0
        %1349 = vrot.lane.b32.xlu0 %v1345, 96
        %v1350 = vpop.permute.xlu0 %1349
        %vm1352 = vcmask 1048320
        %1353 = vst.msk [vmem:[%s336] sm:$0xff] %vm1352, %v1350
        %s1354 = sand.u32 %s230, 1
        %s1355 = scalar_lea.sflag [#allocation3], %s1354
        %s1356 = sand.u32 %s230, 1
        %s1357 = smul.addr %s1356, 8
        %s1358 = scalar_lea.vmem [#allocation2], %s1357
        // Predicated region
        $region57: #{tpu_custom_call.1} parent=55 // pred_check
          %p1359 = pneg %p240
        $region58: #{tpu_custom_call.1} parent=55 // pred_check_branch
          %1361 = sbr.rel (%p1359) target = $region60
        $region59: #{tpu_custom_call.1} parent=55 // pred_region
          %s1363 = ssub.s32 128, 128
          %1364 = vsyncadd %s1355, %s1363
          %s1365 = smul.addr %s23, 128
          %s1366 = scalar_lea.hbm %s9, %s1365
          %s1368 = sshll.u32 %s1358, 4
          %s1369 = int_to_ptr.vmem [resolvable:$true] %s1368
          %1371 = dma.vmem_to_hbm [thread:$0]  %s1369, 128, %s1366, %s1355
        $region60: #{tpu_custom_call.1} parent=55 // pred_fallthru
          _
      $region56: #{tpu_custom_call.1} parent=5 // pred_fallthru
        _
      %p1372 = scmp.le.s32.totalorder 2, %s18
      // Predicated region
      $region61: #{tpu_custom_call.1} parent=5 // pred_check
        %p1373 = pneg %p1372
      $region62: #{tpu_custom_call.1} parent=5 // pred_check_branch
        %1375 = sbr.rel (%p1373) target = $region64
      $region63: #{tpu_custom_call.1} parent=5 // pred_region
        %s1376 = ssub.s32 %s18, 2
        // Predicated region
        $region65: #{tpu_custom_call.1} parent=63 // pred_check
          %p1377 = pneg %p246
        $region66: #{tpu_custom_call.1} parent=63 // pred_check_branch
          %1379 = sbr.rel (%p1377) target = $region68
        $region67: #{tpu_custom_call.1} parent=63 // pred_region
          %s1380 = sand.u32 %s231, 1
          %s1381 = scalar_lea.sflag [#allocation3], %s1380
          %s1382 = sand.u32 %s231, 1
          %s1383 = smul.addr %s1382, 8
          %s1384 = scalar_lea.vmem [#allocation2], %s1383
          %1385 = dma.done %s1381, 128
        $region68: #{tpu_custom_call.1} parent=63 // pred_fallthru
          _
      $region64: #{tpu_custom_call.1} parent=5 // pred_fallthru
        _
    $region6: #{tpu_custom_call.1} parent=1 // loop_footer
      %s22 = sadd.s32 1, %s18
    $region7: #{tpu_custom_call.1} parent=1 // loop_footer_branch
      %17 = sbr.rel target = $region3
    $region8: #{tpu_custom_call.1} parent=1 // loop_exit
      _
    %1386 = vsyncpa [#allocation3], 1
    %s1387 = scalar_lea.sflag [#allocation3], 1
    %1388 = vsyncpa %s1387, 1

</llo_original>
